<compile_context>
chip_gen: v6e
topology: v6e:2x2x1
jax: 0.10.0
libtpu: 0.0.40
codegen_flags: <defaults>
</compile_context>

<pallas_src>
import jax
import jax.numpy as jnp
from jax.experimental import pallas as pl
from jax.experimental.pallas import tpu as pltpu


def _round_up(x: int, m: int) -> int:
    return ((x + m - 1) // m) * m


def _make_kernel(n_rows: int, tile_n: int):
    """Build the per-tile kernel; n_rows/tile_n are static Python ints."""

    def kernel(gnn_ref, llm_ref,
               wg_ref, bg_ref, wl_ref, bl_ref,
               wv_ref, bv_ref, wo_ref, bo_ref,
               wf1a_ref, wf1b_ref, bf1_ref,
               wf2r_ref, bf2_ref,
               partial_ref):
        f32 = jnp.float32
        bf16 = jnp.bfloat16
        i = pl.program_id(0)

        gnn = gnn_ref[...]                      # (tile_n, gnn_dim) bf16
        llm = llm_ref[...]                      # (tile_n, llm_dim) bf16

        # ---- input projections (+ReLU; Dropout identity at inference) ----
        # gnn_proj is kept for structural fidelity with the module, but the
        # outputs do not depend on it (single-key softmax == 1, so the attended
        # value is independent of the query); the compiler is free to drop it.
        _gnn_proj = jnp.maximum(
            jnp.dot(gnn, wg_ref[...], preferred_element_type=f32) + bg_ref[...], 0.0)
        llm_proj = jnp.maximum(
            jnp.dot(llm, wl_ref[...], preferred_element_type=f32) + bl_ref[...], 0.0)
        llm_proj_bf = llm_proj.astype(bf16)

        # ---- attention with a single key per node: weights are exactly 1 ----
        v = jnp.dot(llm_proj_bf, wv_ref[...], preferred_element_type=f32) + bv_ref[...]
        attn_out = (jnp.dot(v.astype(bf16), wo_ref[...], preferred_element_type=f32)
                    + bo_ref[...])

        # ---- fusion MLP ----
        # cat([attn_out, llm_proj], -1) @ Wf1 == attn_out @ Wf1a + llm_proj @ Wf1b
        h1 = jnp.maximum(
            jnp.dot(attn_out.astype(bf16), wf1a_ref[...], preferred_element_type=f32)
            + jnp.dot(llm_proj_bf, wf1b_ref[...], preferred_element_type=f32)
            + bf1_ref[...], 0.0)

        # Linear(H -> 1): VPU broadcast-multiply + lane reduction (avoids a
        # 1-column MXU matmul).
        logits = jnp.sum(h1 * wf2r_ref[...], axis=-1, keepdims=True) + bf2_ref[...]
        score = jax.nn.sigmoid(logits)          # (tile_n, 1) f32

        # Mask rows past the true N (wrapper zero-pads to a multiple of tile_n)
        # and emit this tile's partial sum; the mean is finished wrapper-side.
        row = jax.lax.broadcasted_iota(jnp.int32, score.shape, 0)
        valid = row < (n_rows - i * tile_n)
        partial_ref[...] = jnp.sum(jnp.where(valid, score, 0.0)).reshape(1, 1, 1)

    return kernel


def pssa_forward(gnn, llm, params, attention_mask=None, *, tile_n: int = 1024):
    """Returns (final_score (1,), attention_weights (N, 1, 1)) like PSSA.forward."""
    f32, bf16 = jnp.float32, jnp.bfloat16
    N = gnn.shape[0]
    H = params["wg"].shape[1]
    gnn_dim = params["wg"].shape[0]
    llm_dim = params["wl"].shape[0]

    # Softmax over a single key is identically 1 for every head, so the
    # head-averaged attention weights returned by nn.MultiheadAttention are all
    # ones of shape (N, 1, 1).
    # TODO(synk): PyTorch's default attention_mask=ones((N, N)) is shape-mismatched
    # for a key_padding_mask with src_len=1; any finite additive mask is a no-op for
    # a single-key softmax, so it never enters the kernel.  A fully -inf-masked row
    # would yield NaN in PyTorch; that degenerate case is not reproduced here.
    del attention_mask
    attn_weights = jnp.ones((N, 1, 1), f32)

    # Tile selection: multiple of 16 (bf16 sublane packing); clamp to the data.
    tile_n = max(16, min(tile_n, _round_up(N, 16)))
    n_pad = _round_up(N, tile_n)
    num_tiles = n_pad // tile_n

    def pad_rows(x):
        x = jnp.asarray(x, bf16)
        return jnp.pad(x, ((0, n_pad - N), (0, 0))) if n_pad != N else x

    gnn_p = pad_rows(gnn)
    llm_p = pad_rows(llm)

    wcast = lambda name: params[name].astype(bf16)   # streamed into the MXU
    fcast = lambda name: params[name].astype(f32)    # biases stay f32

    inputs = (
        gnn_p, llm_p,
        wcast("wg"), fcast("bg"), wcast("wl"), fcast("bl"),
        wcast("wv"), fcast("bv"), wcast("wo"), fcast("bo"),
        wcast("wf1a"), wcast("wf1b"), fcast("bf1"),
        params["wf2"].reshape(1, H).astype(f32),     # row-vector for the VPU dot
        fcast("bf2"),
    )

    def tiled_spec(d):
        return pl.BlockSpec((tile_n, d), lambda i: (i, 0))

    def resident_spec(a):
        shape = a.shape
        return pl.BlockSpec(shape, lambda i: (0,) * len(shape))

    in_specs = ([tiled_spec(gnn_dim), tiled_spec(llm_dim)]
                + [resident_spec(a) for a in inputs[2:]])

    flops = 2 * N * H * (gnn_dim + llm_dim + 4 * H + 1)
    bytes_accessed = sum(int(a.size) * a.dtype.itemsize for a in inputs) + 4 * num_tiles
    cost = pl.CostEstimate(flops=flops, transcendentals=N,
                           bytes_accessed=bytes_accessed)

    partials = pl.pallas_call(
        _make_kernel(N, tile_n),
        out_shape=jax.ShapeDtypeStruct((num_tiles, 1, 1), f32),
        grid=(num_tiles,),
        in_specs=in_specs,
        out_specs=pl.BlockSpec((1, 1, 1), lambda i: (i, 0, 0)),
        compiler_params=pltpu.CompilerParams(
            # no cross-iteration state -> axis is parallel (megacore on v7x)
            dimension_semantics=("parallel",),
            # well under the default scoped VMEM on v5e/v6e and v7x (64 MiB phys)
            vmem_limit_bytes=32 * 1024 * 1024),
        cost_estimate=cost,
    )(*inputs)

    final_score = (jnp.sum(partials) / N).reshape(1)
    return final_score, attn_weights


def pssa_reference(gnn, llm, params):
    """Pure-JAX f32 reference of the inference-mode forward."""
    relu = lambda x: jnp.maximum(x, 0.0)
    llm_proj = relu(llm @ params["wl"] + params["bl"])
    v = llm_proj @ params["wv"] + params["bv"]
    attn_out = v @ params["wo"] + params["bo"]                # single-key softmax == 1
    h1 = relu(attn_out @ params["wf1a"] + llm_proj @ params["wf1b"] + params["bf1"])
    score = jax.nn.sigmoid(h1 @ params["wf2"] + params["bf2"])
    return jnp.mean(score, axis=0)                            # (1,)


def init_params(key, gnn_dim, llm_dim, hidden_dim):
    ks = jax.random.split(key, 15)
    s = 0.05

    def w(k, din, dout):
        return s * jax.random.normal(k, (din, dout), jnp.float32)

    def b(k, dout):
        return s * jax.random.normal(k, (1, dout), jnp.float32)

    H = hidden_dim
    return {
        "wg": w(ks[0], gnn_dim, H), "bg": b(ks[1], H),
        "wl": w(ks[2], llm_dim, H), "bl": b(ks[3], H),
        "wv": w(ks[4], H, H), "bv": b(ks[5], H),
        "wo": w(ks[6], H, H), "bo": b(ks[7], H),
        "wf1a": w(ks[8], H, H),          # first half of fusion Linear(2H -> H)
        "wf1b": w(ks[9], H, H),          # second half of fusion Linear(2H -> H)
        "bf1": b(ks[10], H),
        "wf2": w(ks[11], H, 1),
        "bf2": jnp.zeros((1, 1), jnp.float32),
    }


if __name__ == "__main__":
    N, GNN_DIM, LLM_DIM, HIDDEN = 256, 64, 96, 64   # hidden divisible by 4 heads

    key = jax.random.PRNGKey(0)
    k_gnn, k_llm, k_par = jax.random.split(key, 3)
    gnn_embeddings = jax.random.normal(k_gnn, (N, GNN_DIM), jnp.float32)
    llm_embeddings = jax.random.normal(k_llm, (N, LLM_DIM), jnp.float32)
    params = init_params(k_par, GNN_DIM, LLM_DIM, HIDDEN)

    final_score, attention_weights = pssa_forward(
        gnn_embeddings, llm_embeddings, params, tile_n=128)   # 2 grid tiles
    jax.block_until_ready((final_score, attention_weights))

    assert final_score.shape == (1,)
    assert attention_weights.shape == (N, 1, 1)
    assert bool(jnp.all(attention_weights == 1.0))

    ref = pssa_reference(gnn_embeddings, llm_embeddings, params)
    assert abs(float(final_score[0]) - float(ref[0])) < 2e-2, (final_score, ref)

    print("KERNEL_OK")
</pallas_src>

<mosaic_0001>
module attributes {stable_mosaic.version = 11 : i64} {
  func.func @kernel(%arg0: i32, %arg1: memref<128x64xbf16, #tpu.memory_space<vmem>>, %arg2: memref<128x96xbf16, #tpu.memory_space<vmem>>, %arg3: memref<64x64xbf16, #tpu.memory_space<vmem>>, %arg4: memref<1x64xf32, #tpu.memory_space<vmem>>, %arg5: memref<96x64xbf16, #tpu.memory_space<vmem>>, %arg6: memref<1x64xf32, #tpu.memory_space<vmem>>, %arg7: memref<64x64xbf16, #tpu.memory_space<vmem>>, %arg8: memref<1x64xf32, #tpu.memory_space<vmem>>, %arg9: memref<64x64xbf16, #tpu.memory_space<vmem>>, %arg10: memref<1x64xf32, #tpu.memory_space<vmem>>, %arg11: memref<64x64xbf16, #tpu.memory_space<vmem>>, %arg12: memref<64x64xbf16, #tpu.memory_space<vmem>>, %arg13: memref<1x64xf32, #tpu.memory_space<vmem>>, %arg14: memref<1x64xf32, #tpu.memory_space<vmem>>, %arg15: memref<1x1xf32, #tpu.memory_space<vmem>>, %arg16: memref<1x1x1xf32, #tpu.memory_space<vmem>>) attributes {dimension_semantics = [#tpu.dimension_semantics<parallel>], iteration_bounds = array<i64: 2>, scalar_prefetch = 0 : i64, scratch_operands = 0 : i64, tpu.core_type = #tpu.core_type<tc>, window_params = [{transform_indices = @transform_0, window_bounds = array<i64: 128, 64>}, {transform_indices = @transform_1, window_bounds = array<i64: 128, 96>}, {pipeline_mode = #tpu.pipeline_mode<synchronous>, transform_indices = @transform_2, window_bounds = array<i64: 64, 64>}, {pipeline_mode = #tpu.pipeline_mode<synchronous>, transform_indices = @transform_3, window_bounds = array<i64: 1, 64>}, {pipeline_mode = #tpu.pipeline_mode<synchronous>, transform_indices = @transform_4, window_bounds = array<i64: 96, 64>}, {pipeline_mode = #tpu.pipeline_mode<synchronous>, transform_indices = @transform_5, window_bounds = array<i64: 1, 64>}, {pipeline_mode = #tpu.pipeline_mode<synchronous>, transform_indices = @transform_6, window_bounds = array<i64: 64, 64>}, {pipeline_mode = #tpu.pipeline_mode<synchronous>, transform_indices = @transform_7, window_bounds = array<i64: 1, 64>}, {pipeline_mode = #tpu.pipeline_mode<synchronous>, transform_indices = @transform_8, window_bounds = array<i64: 64, 64>}, {pipeline_mode = #tpu.pipeline_mode<synchronous>, transform_indices = @transform_9, window_bounds = array<i64: 1, 64>}, {pipeline_mode = #tpu.pipeline_mode<synchronous>, transform_indices = @transform_10, window_bounds = array<i64: 64, 64>}, {pipeline_mode = #tpu.pipeline_mode<synchronous>, transform_indices = @transform_11, window_bounds = array<i64: 64, 64>}, {pipeline_mode = #tpu.pipeline_mode<synchronous>, transform_indices = @transform_12, window_bounds = array<i64: 1, 64>}, {pipeline_mode = #tpu.pipeline_mode<synchronous>, transform_indices = @transform_13, window_bounds = array<i64: 1, 64>}, {pipeline_mode = #tpu.pipeline_mode<synchronous>, transform_indices = @transform_14, window_bounds = array<i64: 1, 1>}, {transform_indices = @transform_15, window_bounds = array<i64: 1, 1, 1>}]} {
    %c0 = arith.constant 0 : index
    %c0_0 = arith.constant 0 : index
    %0 = vector.load %arg2[%c0, %c0_0] : memref<128x96xbf16, #tpu.memory_space<vmem>>, vector<128x96xbf16>
    %c0_1 = arith.constant 0 : index
    %c0_2 = arith.constant 0 : index
    %1 = vector.load %arg5[%c0_1, %c0_2] : memref<96x64xbf16, #tpu.memory_space<vmem>>, vector<96x64xbf16>
    %cst = arith.constant dense<0.000000e+00> : vector<128x64xf32>
    %2 = tpu.matmul %0, %1, %cst {dimension_numbers = #tpu.dot_dimension_numbers<[1], [0], [0], [1], [0, 0, 1, 1], [], []>} : vector<128x96xbf16>, vector<96x64xbf16>, vector<128x64xf32> -> vector<128x64xf32>
    %c0_3 = arith.constant 0 : index
    %c0_4 = arith.constant 0 : index
    %3 = vector.load %arg6[%c0_3, %c0_4] : memref<1x64xf32, #tpu.memory_space<vmem>>, vector<1x64xf32>
    %4 = vector.broadcast %3 : vector<1x64xf32> to vector<128x64xf32>
    %5 = arith.addf %2, %4 : vector<128x64xf32>
    %cst_5 = arith.constant 0.000000e+00 : f32
    %6 = vector.broadcast %cst_5 : f32 to vector<128x64xf32>
    %7 = arith.maximumf %5, %6 : vector<128x64xf32>
    %8 = arith.truncf %7 : vector<128x64xf32> to vector<128x64xbf16>
    %c0_6 = arith.constant 0 : index
    %c0_7 = arith.constant 0 : index
    %9 = vector.load %arg7[%c0_6, %c0_7] : memref<64x64xbf16, #tpu.memory_space<vmem>>, vector<64x64xbf16>
    %cst_8 = arith.constant dense<0.000000e+00> : vector<128x64xf32>
    %10 = tpu.matmul %8, %9, %cst_8 {dimension_numbers = #tpu.dot_dimension_numbers<[1], [0], [0], [1], [0, 0, 1, 1], [], []>} : vector<128x64xbf16>, vector<64x64xbf16>, vector<128x64xf32> -> vector<128x64xf32>
    %c0_9 = arith.constant 0 : index
    %c0_10 = arith.constant 0 : index
    %11 = vector.load %arg8[%c0_9, %c0_10] : memref<1x64xf32, #tpu.memory_space<vmem>>, vector<1x64xf32>
    %12 = vector.broadcast %11 : vector<1x64xf32> to vector<128x64xf32>
    %13 = arith.addf %10, %12 : vector<128x64xf32>
    %14 = arith.truncf %13 : vector<128x64xf32> to vector<128x64xbf16>
    %c0_11 = arith.constant 0 : index
    %c0_12 = arith.constant 0 : index
    %15 = vector.load %arg9[%c0_11, %c0_12] : memref<64x64xbf16, #tpu.memory_space<vmem>>, vector<64x64xbf16>
    %cst_13 = arith.constant dense<0.000000e+00> : vector<128x64xf32>
    %16 = tpu.matmul %14, %15, %cst_13 {dimension_numbers = #tpu.dot_dimension_numbers<[1], [0], [0], [1], [0, 0, 1, 1], [], []>} : vector<128x64xbf16>, vector<64x64xbf16>, vector<128x64xf32> -> vector<128x64xf32>
    %c0_14 = arith.constant 0 : index
    %c0_15 = arith.constant 0 : index
    %17 = vector.load %arg10[%c0_14, %c0_15] : memref<1x64xf32, #tpu.memory_space<vmem>>, vector<1x64xf32>
    %18 = vector.broadcast %17 : vector<1x64xf32> to vector<128x64xf32>
    %19 = arith.addf %16, %18 : vector<128x64xf32>
    %20 = arith.truncf %19 : vector<128x64xf32> to vector<128x64xbf16>
    %c0_16 = arith.constant 0 : index
    %c0_17 = arith.constant 0 : index
    %21 = vector.load %arg11[%c0_16, %c0_17] : memref<64x64xbf16, #tpu.memory_space<vmem>>, vector<64x64xbf16>
    %cst_18 = arith.constant dense<0.000000e+00> : vector<128x64xf32>
    %22 = tpu.matmul %20, %21, %cst_18 {dimension_numbers = #tpu.dot_dimension_numbers<[1], [0], [0], [1], [0, 0, 1, 1], [], []>} : vector<128x64xbf16>, vector<64x64xbf16>, vector<128x64xf32> -> vector<128x64xf32>
    %c0_19 = arith.constant 0 : index
    %c0_20 = arith.constant 0 : index
    %23 = vector.load %arg12[%c0_19, %c0_20] : memref<64x64xbf16, #tpu.memory_space<vmem>>, vector<64x64xbf16>
    %cst_21 = arith.constant dense<0.000000e+00> : vector<128x64xf32>
    %24 = tpu.matmul %8, %23, %cst_21 {dimension_numbers = #tpu.dot_dimension_numbers<[1], [0], [0], [1], [0, 0, 1, 1], [], []>} : vector<128x64xbf16>, vector<64x64xbf16>, vector<128x64xf32> -> vector<128x64xf32>
    %25 = arith.addf %22, %24 : vector<128x64xf32>
    %c0_22 = arith.constant 0 : index
    %c0_23 = arith.constant 0 : index
    %26 = vector.load %arg13[%c0_22, %c0_23] : memref<1x64xf32, #tpu.memory_space<vmem>>, vector<1x64xf32>
    %27 = vector.broadcast %26 : vector<1x64xf32> to vector<128x64xf32>
    %28 = arith.addf %25, %27 : vector<128x64xf32>
    %cst_24 = arith.constant 0.000000e+00 : f32
    %29 = vector.broadcast %cst_24 : f32 to vector<128x64xf32>
    %30 = arith.maximumf %28, %29 : vector<128x64xf32>
    %c0_25 = arith.constant 0 : index
    %c0_26 = arith.constant 0 : index
    %31 = vector.load %arg14[%c0_25, %c0_26] : memref<1x64xf32, #tpu.memory_space<vmem>>, vector<1x64xf32>
    %32 = vector.broadcast %31 : vector<1x64xf32> to vector<128x64xf32>
    %33 = arith.mulf %30, %32 : vector<128x64xf32>
    %cst_27 = arith.constant dense<0.000000e+00> : vector<128xf32>
    %34 = vector.multi_reduction <add>, %33, %cst_27 [1] : vector<128x64xf32> to vector<128xf32>
    %35 = vector.shape_cast %34 : vector<128xf32> to vector<128x1xf32>
    %c0_28 = arith.constant 0 : index
    %c0_29 = arith.constant 0 : index
    %36 = vector.load %arg15[%c0_28, %c0_29] : memref<1x1xf32, #tpu.memory_space<vmem>>, vector<1x1xf32>
    %37 = vector.broadcast %36 : vector<1x1xf32> to vector<128x1xf32>
    %38 = arith.addf %35, %37 : vector<128x1xf32>
    %39 = arith.negf %38 : vector<128x1xf32>
    %40 = math.exp %39 : vector<128x1xf32>
    %cst_30 = arith.constant 1.000000e+00 : f32
    %41 = vector.broadcast %cst_30 : f32 to vector<128x1xf32>
    %42 = arith.addf %41, %40 : vector<128x1xf32>
    %43 = arith.divf %41, %42 : vector<128x1xf32>
    %44 = tpu.iota {dimensions = array<i32: 0>} : vector<128x1xi32>
    %c128_i32 = arith.constant 128 : i32
    %45 = arith.muli %arg0, %c128_i32 : i32
    %c256_i32 = arith.constant 256 : i32
    %46 = arith.subi %c256_i32, %45 : i32
    %47 = vector.broadcast %46 : i32 to vector<128x1xi32>
    %48 = arith.cmpi slt, %44, %47 : vector<128x1xi32>
    %cst_31 = arith.constant 0.000000e+00 : f32
    %49 = vector.broadcast %cst_31 : f32 to vector<128x1xf32>
    %50 = arith.select %48, %43, %49 : vector<128x1xi1>, vector<128x1xf32>
    %51 = vector.shape_cast %50 : vector<128x1xf32> to vector<1x128x1xf32>
    %cst_32 = arith.constant dense<0.000000e+00> : vector<1xf32>
    %52 = vector.multi_reduction <add>, %51, %cst_32 [1, 2] : vector<1x128x1xf32> to vector<1xf32>
    %53 = vector.shape_cast %52 : vector<1xf32> to vector<1x1x1xf32>
    %54 = vector.extract %53[0, 0, 0] : f32 from vector<1x1x1xf32>
    %55 = vector.broadcast %54 : f32 to vector<1x1x1xf32>
    %c0_33 = arith.constant 0 : index
    %c0_34 = arith.constant 0 : index
    %c0_35 = arith.constant 0 : index
    %56 = vector.load %arg16[%c0_33, %c0_34, %c0_35] : memref<1x1x1xf32, #tpu.memory_space<vmem>>, vector<1x1x1xf32>
    tpu.vector_store %arg16[%c0_33, %c0_34, %c0_35], %55 {strides = array<i32>} : memref<1x1x1xf32, #tpu.memory_space<vmem>>, vector<1x1x1xf32>,
    return
  }
  func.func @transform_0(%arg0: i32) -> (i32, i32) {
    %c0_i32 = arith.constant 0 : i32
    %c0_i32_0 = arith.constant 0 : i32
    return %arg0, %c0_i32 : i32, i32
  }
  func.func @transform_1(%arg0: i32) -> (i32, i32) {
    %c0_i32 = arith.constant 0 : i32
    %c0_i32_0 = arith.constant 0 : i32
    return %arg0, %c0_i32 : i32, i32
  }
  func.func @transform_2(%arg0: i32) -> (i32, i32) {
    %c0_i32 = arith.constant 0 : i32
    %c0_i32_0 = arith.constant 0 : i32
    %c0_i32_1 = arith.constant 0 : i32
    return %c0_i32, %c0_i32_0 : i32, i32
  }
  func.func @transform_3(%arg0: i32) -> (i32, i32) {
    %c0_i32 = arith.constant 0 : i32
    %c0_i32_0 = arith.constant 0 : i32
    %c0_i32_1 = arith.constant 0 : i32
    return %c0_i32, %c0_i32_0 : i32, i32
  }
  func.func @transform_4(%arg0: i32) -> (i32, i32) {
    %c0_i32 = arith.constant 0 : i32
    %c0_i32_0 = arith.constant 0 : i32
    %c0_i32_1 = arith.constant 0 : i32
    return %c0_i32, %c0_i32_0 : i32, i32
  }
  func.func @transform_5(%arg0: i32) -> (i32, i32) {
    %c0_i32 = arith.constant 0 : i32
    %c0_i32_0 = arith.constant 0 : i32
    %c0_i32_1 = arith.constant 0 : i32
    return %c0_i32, %c0_i32_0 : i32, i32
  }
  func.func @transform_6(%arg0: i32) -> (i32, i32) {
    %c0_i32 = arith.constant 0 : i32
    %c0_i32_0 = arith.constant 0 : i32
    %c0_i32_1 = arith.constant 0 : i32
    return %c0_i32, %c0_i32_0 : i32, i32
  }
  func.func @transform_7(%arg0: i32) -> (i32, i32) {
    %c0_i32 = arith.constant 0 : i32
    %c0_i32_0 = arith.constant 0 : i32
    %c0_i32_1 = arith.constant 0 : i32
    return %c0_i32, %c0_i32_0 : i32, i32
  }
  func.func @transform_8(%arg0: i32) -> (i32, i32) {
    %c0_i32 = arith.constant 0 : i32
    %c0_i32_0 = arith.constant 0 : i32
    %c0_i32_1 = arith.constant 0 : i32
    return %c0_i32, %c0_i32_0 : i32, i32
  }
  func.func @transform_9(%arg0: i32) -> (i32, i32) {
    %c0_i32 = arith.constant 0 : i32
    %c0_i32_0 = arith.constant 0 : i32
    %c0_i32_1 = arith.constant 0 : i32
    return %c0_i32, %c0_i32_0 : i32, i32
  }
  func.func @transform_10(%arg0: i32) -> (i32, i32) {
    %c0_i32 = arith.constant 0 : i32
    %c0_i32_0 = arith.constant 0 : i32
    %c0_i32_1 = arith.constant 0 : i32
    return %c0_i32, %c0_i32_0 : i32, i32
  }
  func.func @transform_11(%arg0: i32) -> (i32, i32) {
    %c0_i32 = arith.constant 0 : i32
    %c0_i32_0 = arith.constant 0 : i32
    %c0_i32_1 = arith.constant 0 : i32
    return %c0_i32, %c0_i32_0 : i32, i32
  }
  func.func @transform_12(%arg0: i32) -> (i32, i32) {
    %c0_i32 = arith.constant 0 : i32
    %c0_i32_0 = arith.constant 0 : i32
    %c0_i32_1 = arith.constant 0 : i32
    return %c0_i32, %c0_i32_0 : i32, i32
  }
  func.func @transform_13(%arg0: i32) -> (i32, i32) {
    %c0_i32 = arith.constant 0 : i32
    %c0_i32_0 = arith.constant 0 : i32
    %c0_i32_1 = arith.constant 0 : i32
    return %c0_i32, %c0_i32_0 : i32, i32
  }
  func.func @transform_14(%arg0: i32) -> (i32, i32) {
    %c0_i32 = arith.constant 0 : i32
    %c0_i32_0 = arith.constant 0 : i32
    %c0_i32_1 = arith.constant 0 : i32
    return %c0_i32, %c0_i32_0 : i32, i32
  }
  func.func @transform_15(%arg0: i32) -> (i32, i32, i32) {
    %c0_i32 = arith.constant 0 : i32
    %c0_i32_0 = arith.constant 0 : i32
    %c0_i32_1 = arith.constant 0 : i32
    return %arg0, %c0_i32, %c0_i32_0 : i32, i32, i32
  }
}

</mosaic_0001>

<llo_original>
// kernel: tpu_custom_call.1
$region0: #{tpu_custom_call.1}
  #allocation0 [shape = 'u32[]', space=smem, size = 0x4, offset = 0x4, fixed_abs, tag = 'smem constant byte address 0x4 - core index']
  #allocation1 [shape = 'u32[144,128]{1,0:T(1,128)}', space=vmem, size = 0x12000, scoped, tag = 'internal scratch']
  #allocation2 [shape = 'f32[1,1]{1,0:T(1,128)S(1)}', space=vmem, size = 0x200, scoped, tag = 'scoped memory for tpu_custom_call.1']
  %s0 = inlined_call_operand.vmem [shape: bf16[256,64], index: 0, kind: input, shape index: {}]
  %s1 = inlined_call_operand.vmem [shape: bf16[256,96], index: 1, kind: input, shape index: {}]
  %s2 = inlined_call_operand.vmem [shape: bf16[64,64], index: 2, kind: input, shape index: {}]
  %s3 = inlined_call_operand.vmem [shape: f32[1,64], index: 3, kind: input, shape index: {}]
  %s4 = inlined_call_operand.vmem [shape: bf16[96,64], index: 4, kind: input, shape index: {}]
  %s5 = inlined_call_operand.vmem [shape: f32[1,64], index: 5, kind: input, shape index: {}]
  %s6 = inlined_call_operand.vmem [shape: bf16[64,64], index: 6, kind: input, shape index: {}]
  %s7 = inlined_call_operand.vmem [shape: f32[1,64], index: 7, kind: input, shape index: {}]
  %s8 = inlined_call_operand.vmem [shape: bf16[64,64], index: 8, kind: input, shape index: {}]
  %s9 = inlined_call_operand.vmem [shape: f32[1,64], index: 9, kind: input, shape index: {}]
  %s10 = inlined_call_operand.vmem [shape: bf16[64,64], index: 10, kind: input, shape index: {}]
  %s11 = inlined_call_operand.vmem [shape: bf16[64,64], index: 11, kind: input, shape index: {}]
  %s12 = inlined_call_operand.vmem [shape: f32[1,64], index: 12, kind: input, shape index: {}]
  %s13 = inlined_call_operand.vmem [shape: f32[1,64], index: 13, kind: input, shape index: {}]
  %s14 = inlined_call_operand.<no memory space> [shape: f32[1,1], index: 14, kind: input, shape index: {}]
  %s15 = inlined_call_operand.vmem [shape: f32[2,1,1], index: 15, kind: output, shape index: {}]
  %s16 = sld [smem:[#allocation0]]
  $region93: #{tpu_custom_call.1} parent=0
    _
  %s18 = ssub.s32 1, %s16
  %s19 = scalar_select 0, %s18, %s16
  %v20 = vstv %s14
  %21 = vst [vmem:[#allocation2] sm:$0x1] %v20
  loop: start=0, step=1, limit=4
  $region2: #{tpu_custom_call.1} parent=0 // loop_pre_header
    _
  $region3: #{tpu_custom_call.1} parent=0 // loop_header
    %s23 = sphi 0, %s27
    %p24 = scmp.ge.s32.totalorder %s23, 4
    %s33 = sphi 0, %s35
    %s36 = sphi 0, %s33
    %s37 = sphi 0, %s36
    %s53 = sphi 0, %s37
    %s59 = sphi 0, %s61
    %s62 = sphi 0, %s59
    %s63 = sphi 0, %s62
    %s79 = sphi 0, %s63
    %s83 = sphi 0, %s83
    %s85 = sphi 0, %s83
    %s86 = sphi 0, %s85
    %s100 = sphi 0, %s86
    %s104 = sphi 0, %s104
    %s106 = sphi 0, %s104
    %s107 = sphi 0, %s106
    %s121 = sphi 0, %s107
    %s125 = sphi 0, %s125
    %s127 = sphi 0, %s125
    %s128 = sphi 0, %s127
    %s142 = sphi 0, %s128
    %s146 = sphi 0, %s146
    %s148 = sphi 0, %s146
    %s149 = sphi 0, %s148
    %s163 = sphi 0, %s149
    %s167 = sphi 0, %s167
    %s169 = sphi 0, %s167
    %s170 = sphi 0, %s169
    %s184 = sphi 0, %s170
    %s188 = sphi 0, %s188
    %s190 = sphi 0, %s188
    %s191 = sphi 0, %s190
    %s205 = sphi 0, %s191
    %s209 = sphi 0, %s209
    %s211 = sphi 0, %s209
    %s212 = sphi 0, %s211
    %s226 = sphi 0, %s212
    %s230 = sphi 0, %s230
    %s232 = sphi 0, %s230
    %s233 = sphi 0, %s232
    %s247 = sphi 0, %s233
    %s251 = sphi 0, %s251
    %s253 = sphi 0, %s251
    %s254 = sphi 0, %s253
    %s268 = sphi 0, %s254
    %s272 = sphi 0, %s272
    %s274 = sphi 0, %s272
    %s275 = sphi 0, %s274
    %s289 = sphi 0, %s275
    %s293 = sphi 0, %s293
    %s295 = sphi 0, %s293
    %s296 = sphi 0, %s295
    %s310 = sphi 0, %s296
    %s314 = sphi 0, %s314
    %s316 = sphi 0, %s314
    %s317 = sphi 0, %s316
    %s331 = sphi 0, %s317
    %s335 = sphi 0, %s335
    %s337 = sphi 0, %s335
    %s338 = sphi 0, %s337
    %s352 = sphi 0, %s338
    %s358 = sphi 0, %s360
    %s361 = sphi 0, %s358
    %s362 = sphi 0, %s361
    %s378 = sphi 0, %s362
  $region4: #{tpu_custom_call.1} parent=0 // loop_header_branch
    %26 = sbr.rel (%p24) target = $region8
  $region5: #{tpu_custom_call.1} parent=0 // loop_body
    %s28 = ssub.s32 %s23, 1
    %s29 = ssub.s32 %s23, 2
    %s30 = sadd.s32 %s23, 1
    %s31 = ssub.s32 %s23, %s30
    %p32 = scmp.eq.s32.totalorder %s31, 0
    %s34 = sadd.s32 %s33, 1
    %s35 = scalar_select %p32, %s33, %s34
    %p38 = pneg %p32
    %p39 = scmp.eq.s32.totalorder %s23, 1
    %p40 = por %p38, %p39
    %p41 = scmp.ne.s32.totalorder %s33, %s36
    %p42 = scmp.eq.s32.totalorder %s23, 0
    %p43 = por %p41, %p42
    %p44 = scmp.ne.s32.totalorder %s33, %s36
    %p45 = scmp.eq.s32.totalorder %s28, 1
    %p46 = por %p44, %p45
    %p47 = scmp.ne.s32.totalorder %s36, %s37
    %p48 = scmp.eq.s32.totalorder %s28, 0
    %p49 = por %p47, %p48
    %p50 = scmp.ne.s32.totalorder %s36, %s37
    %p51 = scmp.eq.s32.totalorder %s29, 1
    %p52 = por %p50, %p51
    %p54 = scmp.ne.s32.totalorder %s37, %s53
    %p55 = scmp.eq.s32.totalorder %s29, 0
    %p56 = por %p54, %p55
    %s57 = ssub.s32 %s23, %s30
    %p58 = scmp.eq.s32.totalorder %s57, 0
    %s60 = sadd.s32 %s59, 1
    %s61 = scalar_select %p58, %s59, %s60
    %p64 = pneg %p58
    %p65 = scmp.eq.s32.totalorder %s23, 1
    %p66 = por %p64, %p65
    %p67 = scmp.ne.s32.totalorder %s59, %s62
    %p68 = scmp.eq.s32.totalorder %s23, 0
    %p69 = por %p67, %p68
    %p70 = scmp.ne.s32.totalorder %s59, %s62
    %p71 = scmp.eq.s32.totalorder %s28, 1
    %p72 = por %p70, %p71
    %p73 = scmp.ne.s32.totalorder %s62, %s63
    %p74 = scmp.eq.s32.totalorder %s28, 0
    %p75 = por %p73, %p74
    %p76 = scmp.ne.s32.totalorder %s62, %s63
    %p77 = scmp.eq.s32.totalorder %s29, 1
    %p78 = por %p76, %p77
    %p80 = scmp.ne.s32.totalorder %s63, %s79
    %p81 = scmp.eq.s32.totalorder %s29, 0
    %p82 = por %p80, %p81
    %s84 = sadd.s32 %s83, 1
    %p87 = scmp.eq.s32.totalorder %s23, 1
    %p88 = scmp.ne.s32.totalorder %s83, %s85
    %p89 = scmp.eq.s32.totalorder %s23, 0
    %p90 = por %p88, %p89
    %p91 = scmp.ne.s32.totalorder %s83, %s85
    %p92 = scmp.eq.s32.totalorder %s28, 1
    %p93 = por %p91, %p92
    %p94 = scmp.ne.s32.totalorder %s85, %s86
    %p95 = scmp.eq.s32.totalorder %s28, 0
    %p96 = por %p94, %p95
    %p97 = scmp.ne.s32.totalorder %s85, %s86
    %p98 = scmp.eq.s32.totalorder %s29, 1
    %p99 = por %p97, %p98
    %p101 = scmp.ne.s32.totalorder %s86, %s100
    %p102 = scmp.eq.s32.totalorder %s29, 0
    %p103 = por %p101, %p102
    %s105 = sadd.s32 %s104, 1
    %p108 = scmp.eq.s32.totalorder %s23, 1
    %p109 = scmp.ne.s32.totalorder %s104, %s106
    %p110 = scmp.eq.s32.totalorder %s23, 0
    %p111 = por %p109, %p110
    %p112 = scmp.ne.s32.totalorder %s104, %s106
    %p113 = scmp.eq.s32.totalorder %s28, 1
    %p114 = por %p112, %p113
    %p115 = scmp.ne.s32.totalorder %s106, %s107
    %p116 = scmp.eq.s32.totalorder %s28, 0
    %p117 = por %p115, %p116
    %p118 = scmp.ne.s32.totalorder %s106, %s107
    %p119 = scmp.eq.s32.totalorder %s29, 1
    %p120 = por %p118, %p119
    %p122 = scmp.ne.s32.totalorder %s107, %s121
    %p123 = scmp.eq.s32.totalorder %s29, 0
    %p124 = por %p122, %p123
    %s126 = sadd.s32 %s125, 1
    %p129 = scmp.eq.s32.totalorder %s23, 1
    %p130 = scmp.ne.s32.totalorder %s125, %s127
    %p131 = scmp.eq.s32.totalorder %s23, 0
    %p132 = por %p130, %p131
    %p133 = scmp.ne.s32.totalorder %s125, %s127
    %p134 = scmp.eq.s32.totalorder %s28, 1
    %p135 = por %p133, %p134
    %p136 = scmp.ne.s32.totalorder %s127, %s128
    %p137 = scmp.eq.s32.totalorder %s28, 0
    %p138 = por %p136, %p137
    %p139 = scmp.ne.s32.totalorder %s127, %s128
    %p140 = scmp.eq.s32.totalorder %s29, 1
    %p141 = por %p139, %p140
    %p143 = scmp.ne.s32.totalorder %s128, %s142
    %p144 = scmp.eq.s32.totalorder %s29, 0
    %p145 = por %p143, %p144
    %s147 = sadd.s32 %s146, 1
    %p150 = scmp.eq.s32.totalorder %s23, 1
    %p151 = scmp.ne.s32.totalorder %s146, %s148
    %p152 = scmp.eq.s32.totalorder %s23, 0
    %p153 = por %p151, %p152
    %p154 = scmp.ne.s32.totalorder %s146, %s148
    %p155 = scmp.eq.s32.totalorder %s28, 1
    %p156 = por %p154, %p155
    %p157 = scmp.ne.s32.totalorder %s148, %s149
    %p158 = scmp.eq.s32.totalorder %s28, 0
    %p159 = por %p157, %p158
    %p160 = scmp.ne.s32.totalorder %s148, %s149
    %p161 = scmp.eq.s32.totalorder %s29, 1
    %p162 = por %p160, %p161
    %p164 = scmp.ne.s32.totalorder %s149, %s163
    %p165 = scmp.eq.s32.totalorder %s29, 0
    %p166 = por %p164, %p165
    %s168 = sadd.s32 %s167, 1
    %p171 = scmp.eq.s32.totalorder %s23, 1
    %p172 = scmp.ne.s32.totalorder %s167, %s169
    %p173 = scmp.eq.s32.totalorder %s23, 0
    %p174 = por %p172, %p173
    %p175 = scmp.ne.s32.totalorder %s167, %s169
    %p176 = scmp.eq.s32.totalorder %s28, 1
    %p177 = por %p175, %p176
    %p178 = scmp.ne.s32.totalorder %s169, %s170
    %p179 = scmp.eq.s32.totalorder %s28, 0
    %p180 = por %p178, %p179
    %p181 = scmp.ne.s32.totalorder %s169, %s170
    %p182 = scmp.eq.s32.totalorder %s29, 1
    %p183 = por %p181, %p182
    %p185 = scmp.ne.s32.totalorder %s170, %s184
    %p186 = scmp.eq.s32.totalorder %s29, 0
    %p187 = por %p185, %p186
    %s189 = sadd.s32 %s188, 1
    %p192 = scmp.eq.s32.totalorder %s23, 1
    %p193 = scmp.ne.s32.totalorder %s188, %s190
    %p194 = scmp.eq.s32.totalorder %s23, 0
    %p195 = por %p193, %p194
    %p196 = scmp.ne.s32.totalorder %s188, %s190
    %p197 = scmp.eq.s32.totalorder %s28, 1
    %p198 = por %p196, %p197
    %p199 = scmp.ne.s32.totalorder %s190, %s191
    %p200 = scmp.eq.s32.totalorder %s28, 0
    %p201 = por %p199, %p200
    %p202 = scmp.ne.s32.totalorder %s190, %s191
    %p203 = scmp.eq.s32.totalorder %s29, 1
    %p204 = por %p202, %p203
    %p206 = scmp.ne.s32.totalorder %s191, %s205
    %p207 = scmp.eq.s32.totalorder %s29, 0
    %p208 = por %p206, %p207
    %s210 = sadd.s32 %s209, 1
    %p213 = scmp.eq.s32.totalorder %s23, 1
    %p214 = scmp.ne.s32.totalorder %s209, %s211
    %p215 = scmp.eq.s32.totalorder %s23, 0
    %p216 = por %p214, %p215
    %p217 = scmp.ne.s32.totalorder %s209, %s211
    %p218 = scmp.eq.s32.totalorder %s28, 1
    %p219 = por %p217, %p218
    %p220 = scmp.ne.s32.totalorder %s211, %s212
    %p221 = scmp.eq.s32.totalorder %s28, 0
    %p222 = por %p220, %p221
    %p223 = scmp.ne.s32.totalorder %s211, %s212
    %p224 = scmp.eq.s32.totalorder %s29, 1
    %p225 = por %p223, %p224
    %p227 = scmp.ne.s32.totalorder %s212, %s226
    %p228 = scmp.eq.s32.totalorder %s29, 0
    %p229 = por %p227, %p228
    %s231 = sadd.s32 %s230, 1
    %p234 = scmp.eq.s32.totalorder %s23, 1
    %p235 = scmp.ne.s32.totalorder %s230, %s232
    %p236 = scmp.eq.s32.totalorder %s23, 0
    %p237 = por %p235, %p236
    %p238 = scmp.ne.s32.totalorder %s230, %s232
    %p239 = scmp.eq.s32.totalorder %s28, 1
    %p240 = por %p238, %p239
    %p241 = scmp.ne.s32.totalorder %s232, %s233
    %p242 = scmp.eq.s32.totalorder %s28, 0
    %p243 = por %p241, %p242
    %p244 = scmp.ne.s32.totalorder %s232, %s233
    %p245 = scmp.eq.s32.totalorder %s29, 1
    %p246 = por %p244, %p245
    %p248 = scmp.ne.s32.totalorder %s233, %s247
    %p249 = scmp.eq.s32.totalorder %s29, 0
    %p250 = por %p248, %p249
    %s252 = sadd.s32 %s251, 1
    %p255 = scmp.eq.s32.totalorder %s23, 1
    %p256 = scmp.ne.s32.totalorder %s251, %s253
    %p257 = scmp.eq.s32.totalorder %s23, 0
    %p258 = por %p256, %p257
    %p259 = scmp.ne.s32.totalorder %s251, %s253
    %p260 = scmp.eq.s32.totalorder %s28, 1
    %p261 = por %p259, %p260
    %p262 = scmp.ne.s32.totalorder %s253, %s254
    %p263 = scmp.eq.s32.totalorder %s28, 0
    %p264 = por %p262, %p263
    %p265 = scmp.ne.s32.totalorder %s253, %s254
    %p266 = scmp.eq.s32.totalorder %s29, 1
    %p267 = por %p265, %p266
    %p269 = scmp.ne.s32.totalorder %s254, %s268
    %p270 = scmp.eq.s32.totalorder %s29, 0
    %p271 = por %p269, %p270
    %s273 = sadd.s32 %s272, 1
    %p276 = scmp.eq.s32.totalorder %s23, 1
    %p277 = scmp.ne.s32.totalorder %s272, %s274
    %p278 = scmp.eq.s32.totalorder %s23, 0
    %p279 = por %p277, %p278
    %p280 = scmp.ne.s32.totalorder %s272, %s274
    %p281 = scmp.eq.s32.totalorder %s28, 1
    %p282 = por %p280, %p281
    %p283 = scmp.ne.s32.totalorder %s274, %s275
    %p284 = scmp.eq.s32.totalorder %s28, 0
    %p285 = por %p283, %p284
    %p286 = scmp.ne.s32.totalorder %s274, %s275
    %p287 = scmp.eq.s32.totalorder %s29, 1
    %p288 = por %p286, %p287
    %p290 = scmp.ne.s32.totalorder %s275, %s289
    %p291 = scmp.eq.s32.totalorder %s29, 0
    %p292 = por %p290, %p291
    %s294 = sadd.s32 %s293, 1
    %p297 = scmp.eq.s32.totalorder %s23, 1
    %p298 = scmp.ne.s32.totalorder %s293, %s295
    %p299 = scmp.eq.s32.totalorder %s23, 0
    %p300 = por %p298, %p299
    %p301 = scmp.ne.s32.totalorder %s293, %s295
    %p302 = scmp.eq.s32.totalorder %s28, 1
    %p303 = por %p301, %p302
    %p304 = scmp.ne.s32.totalorder %s295, %s296
    %p305 = scmp.eq.s32.totalorder %s28, 0
    %p306 = por %p304, %p305
    %p307 = scmp.ne.s32.totalorder %s295, %s296
    %p308 = scmp.eq.s32.totalorder %s29, 1
    %p309 = por %p307, %p308
    %p311 = scmp.ne.s32.totalorder %s296, %s310
    %p312 = scmp.eq.s32.totalorder %s29, 0
    %p313 = por %p311, %p312
    %s315 = sadd.s32 %s314, 1
    %p318 = scmp.eq.s32.totalorder %s23, 1
    %p319 = scmp.ne.s32.totalorder %s314, %s316
    %p320 = scmp.eq.s32.totalorder %s23, 0
    %p321 = por %p319, %p320
    %p322 = scmp.ne.s32.totalorder %s314, %s316
    %p323 = scmp.eq.s32.totalorder %s28, 1
    %p324 = por %p322, %p323
    %p325 = scmp.ne.s32.totalorder %s316, %s317
    %p326 = scmp.eq.s32.totalorder %s28, 0
    %p327 = por %p325, %p326
    %p328 = scmp.ne.s32.totalorder %s316, %s317
    %p329 = scmp.eq.s32.totalorder %s29, 1
    %p330 = por %p328, %p329
    %p332 = scmp.ne.s32.totalorder %s317, %s331
    %p333 = scmp.eq.s32.totalorder %s29, 0
    %p334 = por %p332, %p333
    %s336 = sadd.s32 %s335, 1
    %p339 = scmp.eq.s32.totalorder %s23, 1
    %p340 = scmp.ne.s32.totalorder %s335, %s337
    %p341 = scmp.eq.s32.totalorder %s23, 0
    %p342 = por %p340, %p341
    %p343 = scmp.ne.s32.totalorder %s335, %s337
    %p344 = scmp.eq.s32.totalorder %s28, 1
    %p345 = por %p343, %p344
    %p346 = scmp.ne.s32.totalorder %s337, %s338
    %p347 = scmp.eq.s32.totalorder %s28, 0
    %p348 = por %p346, %p347
    %p349 = scmp.ne.s32.totalorder %s337, %s338
    %p350 = scmp.eq.s32.totalorder %s29, 1
    %p351 = por %p349, %p350
    %p353 = scmp.ne.s32.totalorder %s338, %s352
    %p354 = scmp.eq.s32.totalorder %s29, 0
    %p355 = por %p353, %p354
    %s356 = ssub.s32 %s23, %s30
    %p357 = scmp.eq.s32.totalorder %s356, 0
    %s359 = sadd.s32 %s358, 1
    %s360 = scalar_select %p357, %s358, %s359
    %p363 = pneg %p357
    %p364 = scmp.eq.s32.totalorder %s23, 1
    %p365 = por %p363, %p364
    %p366 = scmp.ne.s32.totalorder %s358, %s361
    %p367 = scmp.eq.s32.totalorder %s23, 0
    %p368 = por %p366, %p367
    %p369 = scmp.ne.s32.totalorder %s358, %s361
    %p370 = scmp.eq.s32.totalorder %s28, 1
    %p371 = por %p369, %p370
    %p372 = scmp.ne.s32.totalorder %s361, %s362
    %p373 = scmp.eq.s32.totalorder %s28, 0
    %p374 = por %p372, %p373
    %p375 = scmp.ne.s32.totalorder %s361, %s362
    %p376 = scmp.eq.s32.totalorder %s29, 1
    %p377 = por %p375, %p376
    %p379 = scmp.ne.s32.totalorder %s362, %s378
    %p380 = scmp.eq.s32.totalorder %s29, 0
    %p381 = por %p379, %p380
    %p382 = scmp.le.s32.totalorder 1, %s23
    %p383 = scmp.lt.s32.totalorder %s23, 3
    %p384 = pnand %p382, %p383
    %p385 = pneg %p384
    // Predicated region
    $region9: #{tpu_custom_call.1} parent=5 // pred_check
      _
    $region10: #{tpu_custom_call.1} parent=5 // pred_check_branch
      %387 = sbr.rel (%p384) target = $region12
    $region11: #{tpu_custom_call.1} parent=5 // pred_region
      %s388 = ssub.s32 %s23, 1
      // Predicated region
      $region13: #{tpu_custom_call.1} parent=11 // pred_check
        %p389 = pneg %p96
      $region14: #{tpu_custom_call.1} parent=11 // pred_check_branch
        %391 = sbr.rel (%p389) target = $region16
      $region15: #{tpu_custom_call.1} parent=11 // pred_region
        _
      $region16: #{tpu_custom_call.1} parent=11 // pred_fallthru
        _
      // Predicated region
      $region17: #{tpu_custom_call.1} parent=11 // pred_check
        %p392 = pneg %p117
      $region18: #{tpu_custom_call.1} parent=11 // pred_check_branch
        %394 = sbr.rel (%p392) target = $region20
      $region19: #{tpu_custom_call.1} parent=11 // pred_region
        _
      $region20: #{tpu_custom_call.1} parent=11 // pred_fallthru
        _
      // Predicated region
      $region21: #{tpu_custom_call.1} parent=11 // pred_check
        %p395 = pneg %p138
      $region22: #{tpu_custom_call.1} parent=11 // pred_check_branch
        %397 = sbr.rel (%p395) target = $region24
      $region23: #{tpu_custom_call.1} parent=11 // pred_region
        _
      $region24: #{tpu_custom_call.1} parent=11 // pred_fallthru
        _
      // Predicated region
      $region25: #{tpu_custom_call.1} parent=11 // pred_check
        %p398 = pneg %p159
      $region26: #{tpu_custom_call.1} parent=11 // pred_check_branch
        %400 = sbr.rel (%p398) target = $region28
      $region27: #{tpu_custom_call.1} parent=11 // pred_region
        _
      $region28: #{tpu_custom_call.1} parent=11 // pred_fallthru
        _
      // Predicated region
      $region29: #{tpu_custom_call.1} parent=11 // pred_check
        %p401 = pneg %p180
      $region30: #{tpu_custom_call.1} parent=11 // pred_check_branch
        %403 = sbr.rel (%p401) target = $region32
      $region31: #{tpu_custom_call.1} parent=11 // pred_region
        _
      $region32: #{tpu_custom_call.1} parent=11 // pred_fallthru
        _
      // Predicated region
      $region33: #{tpu_custom_call.1} parent=11 // pred_check
        %p404 = pneg %p201
      $region34: #{tpu_custom_call.1} parent=11 // pred_check_branch
        %406 = sbr.rel (%p404) target = $region36
      $region35: #{tpu_custom_call.1} parent=11 // pred_region
        _
      $region36: #{tpu_custom_call.1} parent=11 // pred_fallthru
        _
      // Predicated region
      $region37: #{tpu_custom_call.1} parent=11 // pred_check
        %p407 = pneg %p222
      $region38: #{tpu_custom_call.1} parent=11 // pred_check_branch
        %409 = sbr.rel (%p407) target = $region40
      $region39: #{tpu_custom_call.1} parent=11 // pred_region
        _
      $region40: #{tpu_custom_call.1} parent=11 // pred_fallthru
        _
      // Predicated region
      $region41: #{tpu_custom_call.1} parent=11 // pred_check
        %p410 = pneg %p243
      $region42: #{tpu_custom_call.1} parent=11 // pred_check_branch
        %412 = sbr.rel (%p410) target = $region44
      $region43: #{tpu_custom_call.1} parent=11 // pred_region
        _
      $region44: #{tpu_custom_call.1} parent=11 // pred_fallthru
        _
      // Predicated region
      $region45: #{tpu_custom_call.1} parent=11 // pred_check
        %p413 = pneg %p264
      $region46: #{tpu_custom_call.1} parent=11 // pred_check_branch
        %415 = sbr.rel (%p413) target = $region48
      $region47: #{tpu_custom_call.1} parent=11 // pred_region
        _
      $region48: #{tpu_custom_call.1} parent=11 // pred_fallthru
        _
      // Predicated region
      $region49: #{tpu_custom_call.1} parent=11 // pred_check
        %p416 = pneg %p285
      $region50: #{tpu_custom_call.1} parent=11 // pred_check_branch
        %418 = sbr.rel (%p416) target = $region52
      $region51: #{tpu_custom_call.1} parent=11 // pred_region
        _
      $region52: #{tpu_custom_call.1} parent=11 // pred_fallthru
        _
      // Predicated region
      $region53: #{tpu_custom_call.1} parent=11 // pred_check
        %p419 = pneg %p306
      $region54: #{tpu_custom_call.1} parent=11 // pred_check_branch
        %421 = sbr.rel (%p419) target = $region56
      $region55: #{tpu_custom_call.1} parent=11 // pred_region
        _
      $region56: #{tpu_custom_call.1} parent=11 // pred_fallthru
        _
      // Predicated region
      $region57: #{tpu_custom_call.1} parent=11 // pred_check
        %p422 = pneg %p327
      $region58: #{tpu_custom_call.1} parent=11 // pred_check_branch
        %424 = sbr.rel (%p422) target = $region60
      $region59: #{tpu_custom_call.1} parent=11 // pred_region
        _
      $region60: #{tpu_custom_call.1} parent=11 // pred_fallthru
        _
      // Predicated region
      $region61: #{tpu_custom_call.1} parent=11 // pred_check
        %p425 = pneg %p348
      $region62: #{tpu_custom_call.1} parent=11 // pred_check_branch
        %427 = sbr.rel (%p425) target = $region64
      $region63: #{tpu_custom_call.1} parent=11 // pred_region
        _
      $region64: #{tpu_custom_call.1} parent=11 // pred_fallthru
        _
    $region12: #{tpu_custom_call.1} parent=5 // pred_fallthru
      _
    %p428 = scmp.lt.s32.totalorder %s23, 2
    // Predicated region
    $region65: #{tpu_custom_call.1} parent=5 // pred_check
      %p429 = pneg %p428
    $region66: #{tpu_custom_call.1} parent=5 // pred_check_branch
      %431 = sbr.rel (%p429) target = $region68
    $region67: #{tpu_custom_call.1} parent=5 // pred_region
      // Predicated region
      $region69: #{tpu_custom_call.1} parent=67 // pred_check
        %p432 = pneg %p43
      $region70: #{tpu_custom_call.1} parent=67 // pred_check_branch
        %434 = sbr.rel (%p432) target = $region72
      $region71: #{tpu_custom_call.1} parent=67 // pred_region
        %s435 = smul.u32 16, %s23
        %p436 = scmp.lt.s32.totalorder %s435, 31
        %s437 = scalar_select %p436, %s435, 31
        %s438 = smul.addr %s437, 4
        %s439 = scalar_lea.vmem %s0, %s438
        %s440 = smul.u32 16, %s23
      $region72: #{tpu_custom_call.1} parent=67 // pred_fallthru
        _
      // Predicated region
      $region73: #{tpu_custom_call.1} parent=67 // pred_check
        %p441 = pneg %p69
      $region74: #{tpu_custom_call.1} parent=67 // pred_check_branch
        %443 = sbr.rel (%p441) target = $region76
      $region75: #{tpu_custom_call.1} parent=67 // pred_region
        %s444 = smul.u32 16, %s23
        %p445 = scmp.lt.s32.totalorder %s444, 31
        %s446 = scalar_select %p445, %s444, 31
        %s447 = smul.addr %s446, 4
        %s448 = scalar_lea.vmem %s1, %s447
        %s449 = smul.u32 16, %s23
      $region76: #{tpu_custom_call.1} parent=67 // pred_fallthru
        _
    $region68: #{tpu_custom_call.1} parent=5 // pred_fallthru
      _
    %p450 = scmp.le.s32.totalorder 1, %s23
    %p451 = scmp.lt.s32.totalorder %s23, 3
    %p452 = pnand %p450, %p451
    %p453 = pneg %p452
    // Predicated region
    $region77: #{tpu_custom_call.1} parent=5 // pred_check
      _
    $region78: #{tpu_custom_call.1} parent=5 // pred_check_branch
      %455 = sbr.rel (%p452) target = $region80
    $region79: #{tpu_custom_call.1} parent=5 // pred_region
      %s456 = ssub.s32 %s23, 1
      %s457 = smul.u32 16, %s28
      %p458 = scmp.lt.s32.totalorder %s457, 31
      %s459 = scalar_select %p458, %s457, 31
      %s460 = smul.addr %s459, 4
      %s461 = scalar_lea.vmem %s0, %s460
      %p462 = pneg %p49
      %p463 = pneg %p46
      %s464 = smul.u32 16, %s28
      %p465 = scmp.lt.s32.totalorder %s464, 31
      %s466 = scalar_select %p465, %s464, 31
      %s467 = smul.addr %s466, 4
      %s468 = scalar_lea.vmem %s1, %s467
      %p469 = pneg %p75
      %p470 = pneg %p72
      %p471 = pneg %p96
      %p472 = pneg %p93
      %p473 = pneg %p117
      %p474 = pneg %p114
      %p475 = pneg %p138
      %p476 = pneg %p135
      %p477 = pneg %p159
      %p478 = pneg %p156
      %p479 = pneg %p180
      %p480 = pneg %p177
      %p481 = pneg %p201
      %p482 = pneg %p198
      %p483 = pneg %p222
      %p484 = pneg %p219
      %p485 = pneg %p243
      %p486 = pneg %p240
      %p487 = pneg %p264
      %p488 = pneg %p261
      %p489 = pneg %p285
      %p490 = pneg %p282
      %p491 = pneg %p306
      %p492 = pneg %p303
      %p493 = pneg %p327
      %p494 = pneg %p324
      %p495 = pneg %p348
      %p496 = pneg %p345
      %p497 = pneg %p374
      %p498 = pneg %p371
      %p499 = scmp.lt.s32.totalorder %s28, 1
      %s500 = scalar_select %p499, %s28, 1
      %s501 = scalar_lea.vmem %s15, %s500
      %s502 = smul.u32 16, %s28
      %p503 = scmp.lt.s32.totalorder %s502, 31
      %s504 = scalar_select %p503, %s502, 31
      %s505 = smul.addr %s504, 4
      %s506 = scalar_lea.vmem %s0, %s505
      %s507 = smul.u32 16, %s28
      %s508 = smul.u32 16, %s28
      %p509 = scmp.lt.s32.totalorder %s508, 31
      %s510 = scalar_select %p509, %s508, 31
      %s511 = smul.addr %s510, 4
      %s512 = scalar_lea.vmem %s1, %s511
      %s513 = smul.u32 16, %s28
      %p514 = scmp.lt.s32.totalorder %s28, 1
      %s515 = scalar_select %p514, %s28, 1
      %s516 = scalar_lea.vmem %s15, %s515
      %v518 = vld [vmem:[%s512] sm:$0xf]
      %v519 = vld [vmem:[%s512 + $0x4] sm:$0xf]
      %v520 = vld [vmem:[%s512 + $0x8] sm:$0xf]
      %v521 = vld [vmem:[%s512 + $0xc] sm:$0xf]
      %v522 = vld [vmem:[%s512 + $0x10] sm:$0xf]
      %v523 = vld [vmem:[%s512 + $0x14] sm:$0xf]
      %v524 = vld [vmem:[%s512 + $0x18] sm:$0xf]
      %v525 = vld [vmem:[%s512 + $0x1c] sm:$0xf]
      %v526 = vld [vmem:[%s512 + $0x20] sm:$0xf]
      %v527 = vld [vmem:[%s512 + $0x24] sm:$0xf]
      %v528 = vld [vmem:[%s512 + $0x28] sm:$0xf]
      %v529 = vld [vmem:[%s512 + $0x2c] sm:$0xf]
      %v530 = vld [vmem:[%s512 + $0x30] sm:$0xf]
      %v531 = vld [vmem:[%s512 + $0x34] sm:$0xf]
      %v532 = vld [vmem:[%s512 + $0x38] sm:$0xf]
      %v533 = vld [vmem:[%s512 + $0x3c] sm:$0xf]
      %v534 = vld [vmem:[%s4] sm:$0xf]
      %v535 = vld [vmem:[%s4 + $0x4] sm:$0xf]
      %v536 = vld [vmem:[%s4 + $0x8] sm:$0xf]
      %v537 = vld [vmem:[%s4 + $0xc] sm:$0xf]
      %v538 = vld [vmem:[%s4 + $0x10] sm:$0xf]
      %v539 = vld [vmem:[%s4 + $0x14] sm:$0xf]
      %v540 = vld [vmem:[%s4 + $0x18] sm:$0xf]
      %v541 = vld [vmem:[%s4 + $0x1c] sm:$0xf]
      %v542 = vld [vmem:[%s4 + $0x20] sm:$0xf]
      %v543 = vld [vmem:[%s4 + $0x24] sm:$0xf]
      %v544 = vld [vmem:[%s4 + $0x28] sm:$0xf]
      %v545 = vld [vmem:[%s4 + $0x2c] sm:$0xf]
      %v546 = vld [vmem:[%s5] sm:$0x1]
      %v548 = vlaneseq
      %v549 = vshrl.u32 %v548, 7
      %v550 = vsub.s32 0, %v549
      %v551 = vrot.slane %v546, %v550
      %v569 = vunpack.c.l.b16 %v518
      %v570 = vunpack.c.l.b16 %v519
      %v571 = vunpack.c.l.b16 %v520
      %v572 = vunpack.c.l.b16 %v521
      %v573 = vunpack.c.l.b16 %v522
      %v574 = vunpack.c.l.b16 %v523
      %v575 = vunpack.c.l.b16 %v524
      %v576 = vunpack.c.l.b16 %v525
      %v577 = vunpack.c.l.b16 %v526
      %v578 = vunpack.c.l.b16 %v527
      %v579 = vunpack.c.l.b16 %v528
      %v580 = vunpack.c.l.b16 %v529
      %v581 = vunpack.c.l.b16 %v530
      %v582 = vunpack.c.l.b16 %v531
      %v583 = vunpack.c.l.b16 %v532
      %v584 = vunpack.c.l.b16 %v533
      %v585 = vpack.c.b16 %v570, %v569
      %v586 = vpack.c.b16 %v572, %v571
      %v587 = vpack.c.b16 %v574, %v573
      %v588 = vpack.c.b16 %v576, %v575
      %v589 = vpack.c.b16 %v578, %v577
      %v590 = vpack.c.b16 %v580, %v579
      %v591 = vpack.c.b16 %v582, %v581
      %v592 = vpack.c.b16 %v584, %v583
      %v605 = vunpack.c.l.b16 %v534
      %v606 = vunpack.c.l.b16 %v535
      %v607 = vunpack.c.l.b16 %v536
      %v608 = vunpack.c.l.b16 %v537
      %v609 = vunpack.c.l.b16 %v538
      %v610 = vunpack.c.l.b16 %v539
      %v611 = vunpack.c.l.b16 %v540
      %v612 = vunpack.c.l.b16 %v541
      %v613 = vunpack.c.l.b16 %v542
      %v614 = vunpack.c.l.b16 %v543
      %v615 = vunpack.c.l.b16 %v544
      %v616 = vunpack.c.l.b16 %v545
      %v617 = vpack.c.b16 %v606, %v605
      %v618 = vpack.c.b16 %v608, %v607
      %v619 = vpack.c.b16 %v610, %v609
      %v620 = vpack.c.b16 %v612, %v611
      %v621 = vpack.c.b16 %v614, %v613
      %v622 = vpack.c.b16 %v616, %v615
      %vm629 = vcmask 785408
      %v631 = vsel %vm629, %v585, 0
      %v634 = vsel %vm629, %v586, 0
      %v637 = vsel %vm629, %v587, 0
      %v640 = vsel %vm629, %v588, 0
      %v643 = vsel %vm629, %v589, 0
      %v646 = vsel %vm629, %v590, 0
      %v649 = vsel %vm629, %v591, 0
      %v652 = vsel %vm629, %v592, 0
      %654 = vmatprep.subr.bf16.mxu0 0
      %655 = vmatpush1.bf16.msra.mxu0 0
      %656 = vmatprep.subr.bf16.mxu0 0
      %657 = vmatpush1.bf16.msra.mxu0 0
      %658 = vmatprep.subr.bf16.mxu0 0
      %659 = vmatpush1.bf16.msra.mxu0 %v622
      %660 = vmatprep.subr.bf16.mxu0 0
      %661 = vmatpush1.bf16.msra.mxu0 %v621
      %662 = vmatprep.subr.bf16.mxu0 0
      %663 = vmatpush1.bf16.msra.mxu0 %v620
      %664 = vmatprep.subr.bf16.mxu0 0
      %665 = vmatpush1.bf16.msra.mxu0 %v619
      %666 = vmatprep.subr.bf16.mxu0 0
      %667 = vmatpush1.bf16.msra.mxu0 %v618
      %668 = vmatprep.subr.bf16.mxu0 0
      %669 = vmatpush1.bf16.msra.mxu0 %v617
      %670 = vmatprep.subr.bf16.mxu0 0
      %671 = vmatpush2.bf16.msra.mxu0 0
      %672 = vmatprep.subr.bf16.mxu0 0
      %673 = vmatpush2.bf16.msra.mxu0 0
      %674 = vmatprep.subr.bf16.mxu0 0
      %675 = vmatpush2.bf16.msra.mxu0 0
      %676 = vmatprep.subr.bf16.mxu0 0
      %677 = vmatpush2.bf16.msra.mxu0 0
      %678 = vmatprep.subr.bf16.mxu0 0
      %679 = vmatpush2.bf16.msra.mxu0 0
      %680 = vmatprep.subr.bf16.mxu0 0
      %681 = vmatpush2.bf16.msra.mxu0 0
      %682 = vmatprep.subr.bf16.mxu0 0
      %683 = vmatpush2.bf16.msra.mxu0 0
      %684 = vmatprep.subr.bf16.mxu0 0
      %685 = vmatpush2.bf16.msra.mxu0 0
      %686 = vmatprep.mubr.bf16.mxu0 0
      %687 = vmatmul.mubr.bf16.gmra.mxu0 %v631
      %v688 = vpop.f32.mrf.mxu0
      %v689 = vadd.f32 %v551, %v688
      %v690 = vpop.f32.mrf.mxu0
      %v691 = vpop.f32.mrf.mxu0
      %v692 = vadd.f32 %v551, %v691
      %v693 = vpop.f32.mrf.mxu0
      %694 = vmatprep.mubr.bf16.mxu0 0
      %695 = vmatmul.mubr.bf16.gmra.mxu0 %v634
      %v696 = vpop.f32.mrf.mxu0
      %v697 = vadd.f32 %v551, %v696
      %v698 = vpop.f32.mrf.mxu0
      %v699 = vpop.f32.mrf.mxu0
      %v700 = vadd.f32 %v551, %v699
      %v701 = vpop.f32.mrf.mxu0
      %702 = vmatprep.mubr.bf16.mxu0 0
      %703 = vmatmul.mubr.bf16.gmra.mxu0 %v637
      %v704 = vpop.f32.mrf.mxu0
      %v705 = vadd.f32 %v551, %v704
      %v706 = vpop.f32.mrf.mxu0
      %v707 = vpop.f32.mrf.mxu0
      %v708 = vadd.f32 %v551, %v707
      %v709 = vpop.f32.mrf.mxu0
      %710 = vmatprep.mubr.bf16.mxu0 0
      %711 = vmatmul.mubr.bf16.gmra.mxu0 %v640
      %v712 = vpop.f32.mrf.mxu0
      %v713 = vadd.f32 %v551, %v712
      %v714 = vpop.f32.mrf.mxu0
      %v715 = vpop.f32.mrf.mxu0
      %v716 = vadd.f32 %v551, %v715
      %v717 = vpop.f32.mrf.mxu0
      %718 = vmatprep.mubr.bf16.mxu0 0
      %719 = vmatmul.mubr.bf16.gmra.mxu0 %v643
      %v720 = vpop.f32.mrf.mxu0
      %v721 = vadd.f32 %v551, %v720
      %v722 = vpop.f32.mrf.mxu0
      %v723 = vpop.f32.mrf.mxu0
      %v724 = vadd.f32 %v551, %v723
      %v725 = vpop.f32.mrf.mxu0
      %726 = vmatprep.mubr.bf16.mxu0 0
      %727 = vmatmul.mubr.bf16.gmra.mxu0 %v646
      %v728 = vpop.f32.mrf.mxu0
      %v729 = vadd.f32 %v551, %v728
      %v730 = vpop.f32.mrf.mxu0
      %v731 = vpop.f32.mrf.mxu0
      %v732 = vadd.f32 %v551, %v731
      %v733 = vpop.f32.mrf.mxu0
      %734 = vmatprep.mubr.bf16.mxu0 0
      %735 = vmatmul.mubr.bf16.gmra.mxu0 %v649
      %v736 = vpop.f32.mrf.mxu0
      %v737 = vadd.f32 %v551, %v736
      %v738 = vpop.f32.mrf.mxu0
      %v739 = vpop.f32.mrf.mxu0
      %v740 = vadd.f32 %v551, %v739
      %v741 = vpop.f32.mrf.mxu0
      %742 = vmatprep.mubr.bf16.mxu0 0
      %743 = vmatmul.mubr.bf16.gmra.mxu0 %v652
      %v744 = vpop.f32.mrf.mxu0
      %v745 = vadd.f32 %v551, %v744
      %v746 = vpop.f32.mrf.mxu0
      %v747 = vpop.f32.mrf.mxu0
      %v748 = vadd.f32 %v551, %v747
      %v749 = vpop.f32.mrf.mxu0
      %750 = vdwg.mxu0
      %v751 = vmax.f32 %v689, 0.0
      %v752 = vmax.f32 %v692, 0.0
      %v753 = vmax.f32 %v697, 0.0
      %v754 = vmax.f32 %v700, 0.0
      %v755 = vmax.f32 %v705, 0.0
      %v756 = vmax.f32 %v708, 0.0
      %v757 = vmax.f32 %v713, 0.0
      %v758 = vmax.f32 %v716, 0.0
      %v759 = vmax.f32 %v721, 0.0
      %v760 = vmax.f32 %v724, 0.0
      %v761 = vmax.f32 %v729, 0.0
      %v762 = vmax.f32 %v732, 0.0
      %v763 = vmax.f32 %v737, 0.0
      %v764 = vmax.f32 %v740, 0.0
      %v765 = vmax.f32 %v745, 0.0
      %v766 = vmax.f32 %v748, 0.0
      %v767 = vpack.c.bf16 %v752, %v751
      %v768 = vpack.c.bf16 %v754, %v753
      %v769 = vpack.c.bf16 %v756, %v755
      %v770 = vpack.c.bf16 %v758, %v757
      %v771 = vpack.c.bf16 %v760, %v759
      %v772 = vpack.c.bf16 %v762, %v761
      %v773 = vpack.c.bf16 %v764, %v763
      %v774 = vpack.c.bf16 %v766, %v765
      %v775 = vld [vmem:[%s6] sm:$0xf]
      %v776 = vld [vmem:[%s6 + $0x4] sm:$0xf]
      %v777 = vld [vmem:[%s6 + $0x8] sm:$0xf]
      %v778 = vld [vmem:[%s6 + $0xc] sm:$0xf]
      %v779 = vld [vmem:[%s6 + $0x10] sm:$0xf]
      %v780 = vld [vmem:[%s6 + $0x14] sm:$0xf]
      %v781 = vld [vmem:[%s6 + $0x18] sm:$0xf]
      %v782 = vld [vmem:[%s6 + $0x1c] sm:$0xf]
      %v783 = vld [vmem:[%s7] sm:$0x1]
      %v785 = vlaneseq
      %v786 = vshrl.u32 %v785, 7
      %v787 = vsub.s32 0, %v786
      %v788 = vrot.slane %v783, %v787
      %v798 = vunpack.c.l.b16 %v775
      %v799 = vunpack.c.l.b16 %v776
      %v800 = vunpack.c.l.b16 %v777
      %v801 = vunpack.c.l.b16 %v778
      %v802 = vunpack.c.l.b16 %v779
      %v803 = vunpack.c.l.b16 %v780
      %v804 = vunpack.c.l.b16 %v781
      %v805 = vunpack.c.l.b16 %v782
      %v806 = vpack.c.b16 %v799, %v798
      %v807 = vpack.c.b16 %v801, %v800
      %v808 = vpack.c.b16 %v803, %v802
      %v809 = vpack.c.b16 %v805, %v804
      %vm814 = vcmask 523264
      %v816 = vsel %vm814, %v767, 0
      %v819 = vsel %vm814, %v768, 0
      %v822 = vsel %vm814, %v769, 0
      %v825 = vsel %vm814, %v770, 0
      %v828 = vsel %vm814, %v771, 0
      %v831 = vsel %vm814, %v772, 0
      %v834 = vsel %vm814, %v773, 0
      %v837 = vsel %vm814, %v774, 0
      %839 = vmatprep.subr.bf16.mxu0 0
      %840 = vmatpush1.bf16.msra.mxu0 0
      %841 = vmatprep.subr.bf16.mxu0 0
      %842 = vmatpush1.bf16.msra.mxu0 0
      %843 = vmatprep.subr.bf16.mxu0 0
      %844 = vmatpush1.bf16.msra.mxu0 0
      %845 = vmatprep.subr.bf16.mxu0 0
      %846 = vmatpush1.bf16.msra.mxu0 0
      %847 = vmatprep.subr.bf16.mxu0 0
      %848 = vmatpush1.bf16.msra.mxu0 %v809
      %849 = vmatprep.subr.bf16.mxu0 0
      %850 = vmatpush1.bf16.msra.mxu0 %v808
      %851 = vmatprep.subr.bf16.mxu0 0
      %852 = vmatpush1.bf16.msra.mxu0 %v807
      %853 = vmatprep.subr.bf16.mxu0 0
      %854 = vmatpush1.bf16.msra.mxu0 %v806
      %855 = vmatprep.subr.bf16.mxu0 0
      %856 = vmatpush2.bf16.msra.mxu0 0
      %857 = vmatprep.subr.bf16.mxu0 0
      %858 = vmatpush2.bf16.msra.mxu0 0
      %859 = vmatprep.subr.bf16.mxu0 0
      %860 = vmatpush2.bf16.msra.mxu0 0
      %861 = vmatprep.subr.bf16.mxu0 0
      %862 = vmatpush2.bf16.msra.mxu0 0
      %863 = vmatprep.subr.bf16.mxu0 0
      %864 = vmatpush2.bf16.msra.mxu0 0
      %865 = vmatprep.subr.bf16.mxu0 0
      %866 = vmatpush2.bf16.msra.mxu0 0
      %867 = vmatprep.subr.bf16.mxu0 0
      %868 = vmatpush2.bf16.msra.mxu0 0
      %869 = vmatprep.subr.bf16.mxu0 0
      %870 = vmatpush2.bf16.msra.mxu0 0
      %871 = vmatprep.mubr.bf16.mxu0 0
      %872 = vmatmul.mubr.bf16.gmra.mxu0 %v816
      %v873 = vpop.f32.mrf.mxu0
      %v874 = vadd.f32 %v788, %v873
      %v875 = vpop.f32.mrf.mxu0
      %v876 = vpop.f32.mrf.mxu0
      %v877 = vadd.f32 %v788, %v876
      %v878 = vpop.f32.mrf.mxu0
      %879 = vmatprep.mubr.bf16.mxu0 0
      %880 = vmatmul.mubr.bf16.gmra.mxu0 %v819
      %v881 = vpop.f32.mrf.mxu0
      %v882 = vadd.f32 %v788, %v881
      %v883 = vpop.f32.mrf.mxu0
      %v884 = vpop.f32.mrf.mxu0
      %v885 = vadd.f32 %v788, %v884
      %v886 = vpop.f32.mrf.mxu0
      %887 = vmatprep.mubr.bf16.mxu0 0
      %888 = vmatmul.mubr.bf16.gmra.mxu0 %v822
      %v889 = vpop.f32.mrf.mxu0
      %v890 = vadd.f32 %v788, %v889
      %v891 = vpop.f32.mrf.mxu0
      %v892 = vpop.f32.mrf.mxu0
      %v893 = vadd.f32 %v788, %v892
      %v894 = vpop.f32.mrf.mxu0
      %895 = vmatprep.mubr.bf16.mxu0 0
      %896 = vmatmul.mubr.bf16.gmra.mxu0 %v825
      %v897 = vpop.f32.mrf.mxu0
      %v898 = vadd.f32 %v788, %v897
      %v899 = vpop.f32.mrf.mxu0
      %v900 = vpop.f32.mrf.mxu0
      %v901 = vadd.f32 %v788, %v900
      %v902 = vpop.f32.mrf.mxu0
      %903 = vmatprep.mubr.bf16.mxu0 0
      %904 = vmatmul.mubr.bf16.gmra.mxu0 %v828
      %v905 = vpop.f32.mrf.mxu0
      %v906 = vadd.f32 %v788, %v905
      %v907 = vpop.f32.mrf.mxu0
      %v908 = vpop.f32.mrf.mxu0
      %v909 = vadd.f32 %v788, %v908
      %v910 = vpop.f32.mrf.mxu0
      %911 = vmatprep.mubr.bf16.mxu0 0
      %912 = vmatmul.mubr.bf16.gmra.mxu0 %v831
      %v913 = vpop.f32.mrf.mxu0
      %v914 = vadd.f32 %v788, %v913
      %v915 = vpop.f32.mrf.mxu0
      %v916 = vpop.f32.mrf.mxu0
      %v917 = vadd.f32 %v788, %v916
      %v918 = vpop.f32.mrf.mxu0
      %919 = vmatprep.mubr.bf16.mxu0 0
      %920 = vmatmul.mubr.bf16.gmra.mxu0 %v834
      %v921 = vpop.f32.mrf.mxu0
      %v922 = vadd.f32 %v788, %v921
      %v923 = vpop.f32.mrf.mxu0
      %v924 = vpop.f32.mrf.mxu0
      %v925 = vadd.f32 %v788, %v924
      %v926 = vpop.f32.mrf.mxu0
      %927 = vmatprep.mubr.bf16.mxu0 0
      %928 = vmatmul.mubr.bf16.gmra.mxu0 %v837
      %v929 = vpop.f32.mrf.mxu0
      %v930 = vadd.f32 %v788, %v929
      %v931 = vpop.f32.mrf.mxu0
      %v932 = vpop.f32.mrf.mxu0
      %v933 = vadd.f32 %v788, %v932
      %v934 = vpop.f32.mrf.mxu0
      %935 = vdwg.mxu0
      %v936 = vpack.c.bf16 %v877, %v874
      %v937 = vpack.c.bf16 %v885, %v882
      %v938 = vpack.c.bf16 %v893, %v890
      %v939 = vpack.c.bf16 %v901, %v898
      %v940 = vpack.c.bf16 %v909, %v906
      %v941 = vpack.c.bf16 %v917, %v914
      %v942 = vpack.c.bf16 %v925, %v922
      %v943 = vpack.c.bf16 %v933, %v930
      %v944 = vld [vmem:[%s8] sm:$0xf]
      %v945 = vld [vmem:[%s8 + $0x4] sm:$0xf]
      %v946 = vld [vmem:[%s8 + $0x8] sm:$0xf]
      %v947 = vld [vmem:[%s8 + $0xc] sm:$0xf]
      %v948 = vld [vmem:[%s8 + $0x10] sm:$0xf]
      %v949 = vld [vmem:[%s8 + $0x14] sm:$0xf]
      %v950 = vld [vmem:[%s8 + $0x18] sm:$0xf]
      %v951 = vld [vmem:[%s8 + $0x1c] sm:$0xf]
      %v952 = vld [vmem:[%s9] sm:$0x1]
      %v954 = vlaneseq
      %v955 = vshrl.u32 %v954, 7
      %v956 = vsub.s32 0, %v955
      %v957 = vrot.slane %v952, %v956
      %v967 = vunpack.c.l.b16 %v944
      %v968 = vunpack.c.l.b16 %v945
      %v969 = vunpack.c.l.b16 %v946
      %v970 = vunpack.c.l.b16 %v947
      %v971 = vunpack.c.l.b16 %v948
      %v972 = vunpack.c.l.b16 %v949
      %v973 = vunpack.c.l.b16 %v950
      %v974 = vunpack.c.l.b16 %v951
      %v975 = vpack.c.b16 %v968, %v967
      %v976 = vpack.c.b16 %v970, %v969
      %v977 = vpack.c.b16 %v972, %v971
      %v978 = vpack.c.b16 %v974, %v973
      %v984 = vsel %vm814, %v936, 0
      %v987 = vsel %vm814, %v937, 0
      %v990 = vsel %vm814, %v938, 0
      %v993 = vsel %vm814, %v939, 0
      %v996 = vsel %vm814, %v940, 0
      %v999 = vsel %vm814, %v941, 0
      %v1002 = vsel %vm814, %v942, 0
      %v1005 = vsel %vm814, %v943, 0
      %1007 = vmatprep.subr.bf16.mxu0 0
      %1008 = vmatpush1.bf16.msra.mxu0 0
      %1009 = vmatprep.subr.bf16.mxu0 0
      %1010 = vmatpush1.bf16.msra.mxu0 0
      %1011 = vmatprep.subr.bf16.mxu0 0
      %1012 = vmatpush1.bf16.msra.mxu0 0
      %1013 = vmatprep.subr.bf16.mxu0 0
      %1014 = vmatpush1.bf16.msra.mxu0 0
      %1015 = vmatprep.subr.bf16.mxu0 0
      %1016 = vmatpush1.bf16.msra.mxu0 %v978
      %1017 = vmatprep.subr.bf16.mxu0 0
      %1018 = vmatpush1.bf16.msra.mxu0 %v977
      %1019 = vmatprep.subr.bf16.mxu0 0
      %1020 = vmatpush1.bf16.msra.mxu0 %v976
      %1021 = vmatprep.subr.bf16.mxu0 0
      %1022 = vmatpush1.bf16.msra.mxu0 %v975
      %1023 = vmatprep.subr.bf16.mxu0 0
      %1024 = vmatpush2.bf16.msra.mxu0 0
      %1025 = vmatprep.subr.bf16.mxu0 0
      %1026 = vmatpush2.bf16.msra.mxu0 0
      %1027 = vmatprep.subr.bf16.mxu0 0
      %1028 = vmatpush2.bf16.msra.mxu0 0
      %1029 = vmatprep.subr.bf16.mxu0 0
      %1030 = vmatpush2.bf16.msra.mxu0 0
      %1031 = vmatprep.subr.bf16.mxu0 0
      %1032 = vmatpush2.bf16.msra.mxu0 0
      %1033 = vmatprep.subr.bf16.mxu0 0
      %1034 = vmatpush2.bf16.msra.mxu0 0
      %1035 = vmatprep.subr.bf16.mxu0 0
      %1036 = vmatpush2.bf16.msra.mxu0 0
      %1037 = vmatprep.subr.bf16.mxu0 0
      %1038 = vmatpush2.bf16.msra.mxu0 0
      %1039 = vmatprep.mubr.bf16.mxu0 0
      %1040 = vmatmul.mubr.bf16.gmra.mxu0 %v984
      %v1041 = vpop.f32.mrf.mxu0
      %v1042 = vadd.f32 %v957, %v1041
      %v1043 = vpop.f32.mrf.mxu0
      %v1044 = vpop.f32.mrf.mxu0
      %v1045 = vadd.f32 %v957, %v1044
      %v1046 = vpop.f32.mrf.mxu0
      %1047 = vmatprep.mubr.bf16.mxu0 0
      %1048 = vmatmul.mubr.bf16.gmra.mxu0 %v987
      %v1049 = vpop.f32.mrf.mxu0
      %v1050 = vadd.f32 %v957, %v1049
      %v1051 = vpop.f32.mrf.mxu0
      %v1052 = vpop.f32.mrf.mxu0
      %v1053 = vadd.f32 %v957, %v1052
      %v1054 = vpop.f32.mrf.mxu0
      %1055 = vmatprep.mubr.bf16.mxu0 0
      %1056 = vmatmul.mubr.bf16.gmra.mxu0 %v990
      %v1057 = vpop.f32.mrf.mxu0
      %v1058 = vadd.f32 %v957, %v1057
      %v1059 = vpop.f32.mrf.mxu0
      %v1060 = vpop.f32.mrf.mxu0
      %v1061 = vadd.f32 %v957, %v1060
      %v1062 = vpop.f32.mrf.mxu0
      %1063 = vmatprep.mubr.bf16.mxu0 0
      %1064 = vmatmul.mubr.bf16.gmra.mxu0 %v993
      %v1065 = vpop.f32.mrf.mxu0
      %v1066 = vadd.f32 %v957, %v1065
      %v1067 = vpop.f32.mrf.mxu0
      %v1068 = vpop.f32.mrf.mxu0
      %v1069 = vadd.f32 %v957, %v1068
      %v1070 = vpop.f32.mrf.mxu0
      %1071 = vmatprep.mubr.bf16.mxu0 0
      %1072 = vmatmul.mubr.bf16.gmra.mxu0 %v996
      %v1073 = vpop.f32.mrf.mxu0
      %v1074 = vadd.f32 %v957, %v1073
      %v1075 = vpop.f32.mrf.mxu0
      %v1076 = vpop.f32.mrf.mxu0
      %v1077 = vadd.f32 %v957, %v1076
      %v1078 = vpop.f32.mrf.mxu0
      %1079 = vmatprep.mubr.bf16.mxu0 0
      %1080 = vmatmul.mubr.bf16.gmra.mxu0 %v999
      %v1081 = vpop.f32.mrf.mxu0
      %v1082 = vadd.f32 %v957, %v1081
      %v1083 = vpop.f32.mrf.mxu0
      %v1084 = vpop.f32.mrf.mxu0
      %v1085 = vadd.f32 %v957, %v1084
      %v1086 = vpop.f32.mrf.mxu0
      %1087 = vmatprep.mubr.bf16.mxu0 0
      %1088 = vmatmul.mubr.bf16.gmra.mxu0 %v1002
      %v1089 = vpop.f32.mrf.mxu0
      %v1090 = vadd.f32 %v957, %v1089
      %v1091 = vpop.f32.mrf.mxu0
      %v1092 = vpop.f32.mrf.mxu0
      %v1093 = vadd.f32 %v957, %v1092
      %v1094 = vpop.f32.mrf.mxu0
      %1095 = vmatprep.mubr.bf16.mxu0 0
      %1096 = vmatmul.mubr.bf16.gmra.mxu0 %v1005
      %v1097 = vpop.f32.mrf.mxu0
      %v1098 = vadd.f32 %v957, %v1097
      %v1099 = vpop.f32.mrf.mxu0
      %v1100 = vpop.f32.mrf.mxu0
      %v1101 = vadd.f32 %v957, %v1100
      %v1102 = vpop.f32.mrf.mxu0
      %1103 = vdwg.mxu0
      %v1104 = vpack.c.bf16 %v1045, %v1042
      %v1105 = vpack.c.bf16 %v1053, %v1050
      %v1106 = vpack.c.bf16 %v1061, %v1058
      %v1107 = vpack.c.bf16 %v1069, %v1066
      %v1108 = vpack.c.bf16 %v1077, %v1074
      %v1109 = vpack.c.bf16 %v1085, %v1082
      %v1110 = vpack.c.bf16 %v1093, %v1090
      %v1111 = vpack.c.bf16 %v1101, %v1098
      %v1112 = vld [vmem:[%s10] sm:$0xf]
      %v1113 = vld [vmem:[%s10 + $0x4] sm:$0xf]
      %v1114 = vld [vmem:[%s10 + $0x8] sm:$0xf]
      %v1115 = vld [vmem:[%s10 + $0xc] sm:$0xf]
      %v1116 = vld [vmem:[%s10 + $0x10] sm:$0xf]
      %v1117 = vld [vmem:[%s10 + $0x14] sm:$0xf]
      %v1118 = vld [vmem:[%s10 + $0x18] sm:$0xf]
      %v1119 = vld [vmem:[%s10 + $0x1c] sm:$0xf]
      %v1120 = vld [vmem:[%s11] sm:$0xf]
      %v1121 = vld [vmem:[%s11 + $0x4] sm:$0xf]
      %v1122 = vld [vmem:[%s11 + $0x8] sm:$0xf]
      %v1123 = vld [vmem:[%s11 + $0xc] sm:$0xf]
      %v1124 = vld [vmem:[%s11 + $0x10] sm:$0xf]
      %v1125 = vld [vmem:[%s11 + $0x14] sm:$0xf]
      %v1126 = vld [vmem:[%s11 + $0x18] sm:$0xf]
      %v1127 = vld [vmem:[%s11 + $0x1c] sm:$0xf]
      %v1136 = vunpack.c.l.b16 %v1120
      %v1137 = vunpack.c.l.b16 %v1121
      %v1138 = vunpack.c.l.b16 %v1122
      %v1139 = vunpack.c.l.b16 %v1123
      %v1140 = vunpack.c.l.b16 %v1124
      %v1141 = vunpack.c.l.b16 %v1125
      %v1142 = vunpack.c.l.b16 %v1126
      %v1143 = vunpack.c.l.b16 %v1127
      %v1144 = vpack.c.b16 %v1137, %v1136
      %v1145 = vpack.c.b16 %v1139, %v1138
      %v1146 = vpack.c.b16 %v1141, %v1140
      %v1147 = vpack.c.b16 %v1143, %v1142
      %1152 = vmatprep.subr.bf16.mxu0 0
      %1153 = vmatpush1.bf16.msra.mxu0 0
      %1154 = vmatprep.subr.bf16.mxu0 0
      %1155 = vmatpush1.bf16.msra.mxu0 0
      %1156 = vmatprep.subr.bf16.mxu0 0
      %1157 = vmatpush1.bf16.msra.mxu0 0
      %1158 = vmatprep.subr.bf16.mxu0 0
      %1159 = vmatpush1.bf16.msra.mxu0 0
      %1160 = vmatprep.subr.bf16.mxu0 0
      %1161 = vmatpush1.bf16.msra.mxu0 %v1147
      %1162 = vmatprep.subr.bf16.mxu0 0
      %1163 = vmatpush1.bf16.msra.mxu0 %v1146
      %1164 = vmatprep.subr.bf16.mxu0 0
      %1165 = vmatpush1.bf16.msra.mxu0 %v1145
      %1166 = vmatprep.subr.bf16.mxu0 0
      %1167 = vmatpush1.bf16.msra.mxu0 %v1144
      %1168 = vmatprep.subr.bf16.mxu0 0
      %1169 = vmatpush2.bf16.msra.mxu0 0
      %1170 = vmatprep.subr.bf16.mxu0 0
      %1171 = vmatpush2.bf16.msra.mxu0 0
      %1172 = vmatprep.subr.bf16.mxu0 0
      %1173 = vmatpush2.bf16.msra.mxu0 0
      %1174 = vmatprep.subr.bf16.mxu0 0
      %1175 = vmatpush2.bf16.msra.mxu0 0
      %1176 = vmatprep.subr.bf16.mxu0 0
      %1177 = vmatpush2.bf16.msra.mxu0 0
      %1178 = vmatprep.subr.bf16.mxu0 0
      %1179 = vmatpush2.bf16.msra.mxu0 0
      %1180 = vmatprep.subr.bf16.mxu0 0
      %1181 = vmatpush2.bf16.msra.mxu0 0
      %1182 = vmatprep.subr.bf16.mxu0 0
      %1183 = vmatpush2.bf16.msra.mxu0 0
      %1184 = vmatprep.mubr.bf16.mxu0 0
      %1185 = vmatmul.mubr.bf16.gmra.mxu0 %v816
      %v1186 = vpop.f32.mrf.mxu0
      %v1187 = vadd.f32 0.0, %v1186
      %v1188 = vpop.f32.mrf.mxu0
      %v1189 = vpop.f32.mrf.mxu0
      %v1190 = vadd.f32 0.0, %v1189
      %v1191 = vpop.f32.mrf.mxu0
      %1192 = vmatprep.mubr.bf16.mxu0 0
      %1193 = vmatmul.mubr.bf16.gmra.mxu0 %v819
      %v1194 = vpop.f32.mrf.mxu0
      %v1195 = vadd.f32 0.0, %v1194
      %v1196 = vpop.f32.mrf.mxu0
      %v1197 = vpop.f32.mrf.mxu0
      %v1198 = vadd.f32 0.0, %v1197
      %v1199 = vpop.f32.mrf.mxu0
      %1200 = vmatprep.mubr.bf16.mxu0 0
      %1201 = vmatmul.mubr.bf16.gmra.mxu0 %v822
      %v1202 = vpop.f32.mrf.mxu0
      %v1203 = vadd.f32 0.0, %v1202
      %v1204 = vpop.f32.mrf.mxu0
      %v1205 = vpop.f32.mrf.mxu0
      %v1206 = vadd.f32 0.0, %v1205
      %v1207 = vpop.f32.mrf.mxu0
      %1208 = vmatprep.mubr.bf16.mxu0 0
      %1209 = vmatmul.mubr.bf16.gmra.mxu0 %v825
      %v1210 = vpop.f32.mrf.mxu0
      %v1211 = vadd.f32 0.0, %v1210
      %v1212 = vpop.f32.mrf.mxu0
      %v1213 = vpop.f32.mrf.mxu0
      %v1214 = vadd.f32 0.0, %v1213
      %v1215 = vpop.f32.mrf.mxu0
      %1216 = vmatprep.mubr.bf16.mxu0 0
      %1217 = vmatmul.mubr.bf16.gmra.mxu0 %v828
      %v1218 = vpop.f32.mrf.mxu0
      %v1219 = vadd.f32 0.0, %v1218
      %v1220 = vpop.f32.mrf.mxu0
      %v1221 = vpop.f32.mrf.mxu0
      %v1222 = vadd.f32 0.0, %v1221
      %v1223 = vpop.f32.mrf.mxu0
      %1224 = vmatprep.mubr.bf16.mxu0 0
      %1225 = vmatmul.mubr.bf16.gmra.mxu0 %v831
      %v1226 = vpop.f32.mrf.mxu0
      %v1227 = vadd.f32 0.0, %v1226
      %v1228 = vpop.f32.mrf.mxu0
      %v1229 = vpop.f32.mrf.mxu0
      %v1230 = vadd.f32 0.0, %v1229
      %v1231 = vpop.f32.mrf.mxu0
      %1232 = vmatprep.mubr.bf16.mxu0 0
      %1233 = vmatmul.mubr.bf16.gmra.mxu0 %v834
      %v1234 = vpop.f32.mrf.mxu0
      %v1235 = vadd.f32 0.0, %v1234
      %v1236 = vpop.f32.mrf.mxu0
      %v1237 = vpop.f32.mrf.mxu0
      %v1238 = vadd.f32 0.0, %v1237
      %v1239 = vpop.f32.mrf.mxu0
      %1240 = vmatprep.mubr.bf16.mxu0 0
      %1241 = vmatmul.mubr.bf16.gmra.mxu0 %v837
      %v1242 = vpop.f32.mrf.mxu0
      %v1243 = vadd.f32 0.0, %v1242
      %v1244 = vpop.f32.mrf.mxu0
      %v1245 = vpop.f32.mrf.mxu0
      %v1246 = vadd.f32 0.0, %v1245
      %v1247 = vpop.f32.mrf.mxu0
      %1248 = vdwg.mxu0
      %v1257 = vunpack.c.l.b16 %v1112
      %v1258 = vunpack.c.l.b16 %v1113
      %v1259 = vunpack.c.l.b16 %v1114
      %v1260 = vunpack.c.l.b16 %v1115
      %v1261 = vunpack.c.l.b16 %v1116
      %v1262 = vunpack.c.l.b16 %v1117
      %v1263 = vunpack.c.l.b16 %v1118
      %v1264 = vunpack.c.l.b16 %v1119
      %v1265 = vpack.c.b16 %v1258, %v1257
      %v1266 = vpack.c.b16 %v1260, %v1259
      %v1267 = vpack.c.b16 %v1262, %v1261
      %v1268 = vpack.c.b16 %v1264, %v1263
      %v1274 = vsel %vm814, %v1104, 0
      %v1277 = vsel %vm814, %v1105, 0
      %v1280 = vsel %vm814, %v1106, 0
      %v1283 = vsel %vm814, %v1107, 0
      %v1286 = vsel %vm814, %v1108, 0
      %v1289 = vsel %vm814, %v1109, 0
      %v1292 = vsel %vm814, %v1110, 0
      %v1295 = vsel %vm814, %v1111, 0
      %1297 = vmatprep.subr.bf16.mxu0 0
      %1298 = vmatpush1.bf16.msra.mxu0 0
      %1299 = vmatprep.subr.bf16.mxu0 0
      %1300 = vmatpush1.bf16.msra.mxu0 0
      %1301 = vmatprep.subr.bf16.mxu0 0
      %1302 = vmatpush1.bf16.msra.mxu0 0
      %1303 = vmatprep.subr.bf16.mxu0 0
      %1304 = vmatpush1.bf16.msra.mxu0 0
      %1305 = vmatprep.subr.bf16.mxu0 0
      %1306 = vmatpush1.bf16.msra.mxu0 %v1268
      %1307 = vmatprep.subr.bf16.mxu0 0
      %1308 = vmatpush1.bf16.msra.mxu0 %v1267
      %1309 = vmatprep.subr.bf16.mxu0 0
      %1310 = vmatpush1.bf16.msra.mxu0 %v1266
      %1311 = vmatprep.subr.bf16.mxu0 0
      %1312 = vmatpush1.bf16.msra.mxu0 %v1265
      %1313 = vmatprep.subr.bf16.mxu0 0
      %1314 = vmatpush2.bf16.msra.mxu0 0
      %1315 = vmatprep.subr.bf16.mxu0 0
      %1316 = vmatpush2.bf16.msra.mxu0 0
      %1317 = vmatprep.subr.bf16.mxu0 0
      %1318 = vmatpush2.bf16.msra.mxu0 0
      %1319 = vmatprep.subr.bf16.mxu0 0
      %1320 = vmatpush2.bf16.msra.mxu0 0
      %1321 = vmatprep.subr.bf16.mxu0 0
      %1322 = vmatpush2.bf16.msra.mxu0 0
      %1323 = vmatprep.subr.bf16.mxu0 0
      %1324 = vmatpush2.bf16.msra.mxu0 0
      %1325 = vmatprep.subr.bf16.mxu0 0
      %1326 = vmatpush2.bf16.msra.mxu0 0
      %1327 = vmatprep.subr.bf16.mxu0 0
      %1328 = vmatpush2.bf16.msra.mxu0 0
      %1329 = vmatprep.mubr.bf16.mxu0 0
      %1330 = vmatmul.mubr.bf16.gmra.mxu0 %v1274
      %v1331 = vpop.f32.mrf.mxu0
      %v1332 = vadd.f32 %v1187, %v1331
      %v1333 = vpop.f32.mrf.mxu0
      %v1334 = vpop.f32.mrf.mxu0
      %v1335 = vadd.f32 %v1190, %v1334
      %v1336 = vpop.f32.mrf.mxu0
      %1337 = vmatprep.mubr.bf16.mxu0 0
      %1338 = vmatmul.mubr.bf16.gmra.mxu0 %v1277
      %v1339 = vpop.f32.mrf.mxu0
      %v1340 = vadd.f32 %v1195, %v1339
      %v1341 = vpop.f32.mrf.mxu0
      %v1342 = vpop.f32.mrf.mxu0
      %v1343 = vadd.f32 %v1198, %v1342
      %v1344 = vpop.f32.mrf.mxu0
      %1345 = vmatprep.mubr.bf16.mxu0 0
      %1346 = vmatmul.mubr.bf16.gmra.mxu0 %v1280
      %v1347 = vpop.f32.mrf.mxu0
      %v1348 = vadd.f32 %v1203, %v1347
      %v1349 = vpop.f32.mrf.mxu0
      %v1350 = vpop.f32.mrf.mxu0
      %v1351 = vadd.f32 %v1206, %v1350
      %v1352 = vpop.f32.mrf.mxu0
      %1353 = vmatprep.mubr.bf16.mxu0 0
      %1354 = vmatmul.mubr.bf16.gmra.mxu0 %v1283
      %v1355 = vpop.f32.mrf.mxu0
      %v1356 = vadd.f32 %v1211, %v1355
      %v1357 = vpop.f32.mrf.mxu0
      %v1358 = vpop.f32.mrf.mxu0
      %v1359 = vadd.f32 %v1214, %v1358
      %v1360 = vpop.f32.mrf.mxu0
      %1361 = vmatprep.mubr.bf16.mxu0 0
      %1362 = vmatmul.mubr.bf16.gmra.mxu0 %v1286
      %v1363 = vpop.f32.mrf.mxu0
      %v1364 = vadd.f32 %v1219, %v1363
      %v1365 = vpop.f32.mrf.mxu0
      %v1366 = vpop.f32.mrf.mxu0
      %v1367 = vadd.f32 %v1222, %v1366
      %v1368 = vpop.f32.mrf.mxu0
      %1369 = vmatprep.mubr.bf16.mxu0 0
      %1370 = vmatmul.mubr.bf16.gmra.mxu0 %v1289
      %v1371 = vpop.f32.mrf.mxu0
      %v1372 = vadd.f32 %v1227, %v1371
      %v1373 = vpop.f32.mrf.mxu0
      %v1374 = vpop.f32.mrf.mxu0
      %v1375 = vadd.f32 %v1230, %v1374
      %v1376 = vpop.f32.mrf.mxu0
      %1377 = vmatprep.mubr.bf16.mxu0 0
      %1378 = vmatmul.mubr.bf16.gmra.mxu0 %v1292
      %v1379 = vpop.f32.mrf.mxu0
      %v1380 = vadd.f32 %v1235, %v1379
      %v1381 = vpop.f32.mrf.mxu0
      %v1382 = vpop.f32.mrf.mxu0
      %v1383 = vadd.f32 %v1238, %v1382
      %v1384 = vpop.f32.mrf.mxu0
      %1385 = vmatprep.mubr.bf16.mxu0 0
      %1386 = vmatmul.mubr.bf16.gmra.mxu0 %v1295
      %v1387 = vpop.f32.mrf.mxu0
      %v1388 = vadd.f32 %v1243, %v1387
      %v1389 = vpop.f32.mrf.mxu0
      %v1390 = vpop.f32.mrf.mxu0
      %v1391 = vadd.f32 %v1246, %v1390
      %v1392 = vpop.f32.mrf.mxu0
      %1393 = vdwg.mxu0
      %v1394 = vld [vmem:[%s12] sm:$0x1]
      %v1396 = vlaneseq
      %v1397 = vshrl.u32 %v1396, 7
      %v1398 = vsub.s32 0, %v1397
      %v1399 = vrot.slane %v1394, %v1398
      %v1401 = vadd.f32 %v1332, %v1399
      %v1402 = vadd.f32 %v1335, %v1399
      %v1403 = vadd.f32 %v1340, %v1399
      %v1404 = vadd.f32 %v1343, %v1399
      %v1405 = vadd.f32 %v1348, %v1399
      %v1406 = vadd.f32 %v1351, %v1399
      %v1407 = vadd.f32 %v1356, %v1399
      %v1408 = vadd.f32 %v1359, %v1399
      %v1409 = vadd.f32 %v1364, %v1399
      %v1410 = vadd.f32 %v1367, %v1399
      %v1411 = vadd.f32 %v1372, %v1399
      %v1412 = vadd.f32 %v1375, %v1399
      %v1413 = vadd.f32 %v1380, %v1399
      %v1414 = vadd.f32 %v1383, %v1399
      %v1415 = vadd.f32 %v1388, %v1399
      %v1416 = vadd.f32 %v1391, %v1399
      %v1417 = vmax.f32 %v1401, 0.0
      %v1418 = vmax.f32 %v1402, 0.0
      %v1419 = vmax.f32 %v1403, 0.0
      %v1420 = vmax.f32 %v1404, 0.0
      %v1421 = vmax.f32 %v1405, 0.0
      %v1422 = vmax.f32 %v1406, 0.0
      %v1423 = vmax.f32 %v1407, 0.0
      %v1424 = vmax.f32 %v1408, 0.0
      %v1425 = vmax.f32 %v1409, 0.0
      %v1426 = vmax.f32 %v1410, 0.0
      %v1427 = vmax.f32 %v1411, 0.0
      %v1428 = vmax.f32 %v1412, 0.0
      %v1429 = vmax.f32 %v1413, 0.0
      %v1430 = vmax.f32 %v1414, 0.0
      %v1431 = vmax.f32 %v1415, 0.0
      %v1432 = vmax.f32 %v1416, 0.0
      %v1433 = vld [vmem:[%s13] sm:$0x1]
      %v1435 = vlaneseq
      %v1436 = vshrl.u32 %v1435, 7
      %v1437 = vsub.s32 0, %v1436
      %v1438 = vrot.slane %v1433, %v1437
      %v1440 = vmul.f32 %v1417, %v1438
      %v1441 = vmul.f32 %v1418, %v1438
      %v1442 = vmul.f32 %v1419, %v1438
      %v1443 = vmul.f32 %v1420, %v1438
      %v1444 = vmul.f32 %v1421, %v1438
      %v1445 = vmul.f32 %v1422, %v1438
      %v1446 = vmul.f32 %v1423, %v1438
      %v1447 = vmul.f32 %v1424, %v1438
      %v1448 = vmul.f32 %v1425, %v1438
      %v1449 = vmul.f32 %v1426, %v1438
      %v1450 = vmul.f32 %v1427, %v1438
      %v1451 = vmul.f32 %v1428, %v1438
      %v1452 = vmul.f32 %v1429, %v1438
      %v1453 = vmul.f32 %v1430, %v1438
      %v1454 = vmul.f32 %v1431, %v1438
      %v1455 = vmul.f32 %v1432, %v1438
      %v1456 = vsel %vm814, %v1440, 0.0
      %1457 = vadd.xlane.f32.xlu0 %v1456
      %v1458 = vpop.xlane.xlu0 %1457
      %v1459 = vsel %vm814, %v1441, 0.0
      %1460 = vadd.xlane.f32.xlu0 %v1459
      %v1461 = vpop.xlane.xlu0 %1460
      %v1462 = vsel %vm814, %v1442, 0.0
      %1463 = vadd.xlane.f32.xlu0 %v1462
      %v1464 = vpop.xlane.xlu0 %1463
      %v1465 = vsel %vm814, %v1443, 0.0
      %1466 = vadd.xlane.f32.xlu0 %v1465
      %v1467 = vpop.xlane.xlu0 %1466
      %v1468 = vsel %vm814, %v1444, 0.0
      %1469 = vadd.xlane.f32.xlu0 %v1468
      %v1470 = vpop.xlane.xlu0 %1469
      %v1471 = vsel %vm814, %v1445, 0.0
      %1472 = vadd.xlane.f32.xlu0 %v1471
      %v1473 = vpop.xlane.xlu0 %1472
      %v1474 = vsel %vm814, %v1446, 0.0
      %1475 = vadd.xlane.f32.xlu0 %v1474
      %v1476 = vpop.xlane.xlu0 %1475
      %v1477 = vsel %vm814, %v1447, 0.0
      %1478 = vadd.xlane.f32.xlu0 %v1477
      %v1479 = vpop.xlane.xlu0 %1478
      %v1480 = vsel %vm814, %v1448, 0.0
      %1481 = vadd.xlane.f32.xlu0 %v1480
      %v1482 = vpop.xlane.xlu0 %1481
      %v1483 = vsel %vm814, %v1449, 0.0
      %1484 = vadd.xlane.f32.xlu0 %v1483
      %v1485 = vpop.xlane.xlu0 %1484
      %v1486 = vsel %vm814, %v1450, 0.0
      %1487 = vadd.xlane.f32.xlu0 %v1486
      %v1488 = vpop.xlane.xlu0 %1487
      %v1489 = vsel %vm814, %v1451, 0.0
      %1490 = vadd.xlane.f32.xlu0 %v1489
      %v1491 = vpop.xlane.xlu0 %1490
      %v1492 = vsel %vm814, %v1452, 0.0
      %1493 = vadd.xlane.f32.xlu0 %v1492
      %v1494 = vpop.xlane.xlu0 %1493
      %v1495 = vsel %vm814, %v1453, 0.0
      %1496 = vadd.xlane.f32.xlu0 %v1495
      %v1497 = vpop.xlane.xlu0 %1496
      %v1498 = vsel %vm814, %v1454, 0.0
      %1499 = vadd.xlane.f32.xlu0 %v1498
      %v1500 = vpop.xlane.xlu0 %1499
      %v1501 = vsel %vm814, %v1455, 0.0
      %1502 = vadd.xlane.f32.xlu0 %v1501
      %v1503 = vpop.xlane.xlu0 %1502
      %v1504 = vld [vmem:[#allocation2] sm:$0x1]
      %v1506 = vlaneseq
      %v1507 = vshrl.u32 %v1506, 7
      %v1508 = vsub.s32 0, %v1507
      %v1509 = vrot.slane %v1504, %v1508
      %v1511 = vadd.f32 %v1458, %v1509
      %v1512 = vadd.f32 %v1461, %v1509
      %v1513 = vadd.f32 %v1464, %v1509
      %v1514 = vadd.f32 %v1467, %v1509
      %v1515 = vadd.f32 %v1470, %v1509
      %v1516 = vadd.f32 %v1473, %v1509
      %v1517 = vadd.f32 %v1476, %v1509
      %v1518 = vadd.f32 %v1479, %v1509
      %v1519 = vadd.f32 %v1482, %v1509
      %v1520 = vadd.f32 %v1485, %v1509
      %v1521 = vadd.f32 %v1488, %v1509
      %v1522 = vadd.f32 %v1491, %v1509
      %v1523 = vadd.f32 %v1494, %v1509
      %v1524 = vadd.f32 %v1497, %v1509
      %v1525 = vadd.f32 %v1500, %v1509
      %v1526 = vadd.f32 %v1503, %v1509
      %v1527 = vxor.u32 %v1511, 2147483648
      %v1528 = vxor.u32 %v1512, 2147483648
      %v1529 = vxor.u32 %v1513, 2147483648
      %v1530 = vxor.u32 %v1514, 2147483648
      %v1531 = vxor.u32 %v1515, 2147483648
      %v1532 = vxor.u32 %v1516, 2147483648
      %v1533 = vxor.u32 %v1517, 2147483648
      %v1534 = vxor.u32 %v1518, 2147483648
      %v1535 = vxor.u32 %v1519, 2147483648
      %v1536 = vxor.u32 %v1520, 2147483648
      %v1537 = vxor.u32 %v1521, 2147483648
      %v1538 = vxor.u32 %v1522, 2147483648
      %v1539 = vxor.u32 %v1523, 2147483648
      %v1540 = vxor.u32 %v1524, 2147483648
      %v1541 = vxor.u32 %v1525, 2147483648
      %v1542 = vxor.u32 %v1526, 2147483648
      %v1543 = vmul.f32 %v1527, 1.442695
      %v1544 = vpow.pop %v1543
      %v1545 = vmul.f32 %v1528, 1.442695
      %v1546 = vpow.pop %v1545
      %v1547 = vmul.f32 %v1529, 1.442695
      %v1548 = vpow.pop %v1547
      %v1549 = vmul.f32 %v1530, 1.442695
      %v1550 = vpow.pop %v1549
      %v1551 = vmul.f32 %v1531, 1.442695
      %v1552 = vpow.pop %v1551
      %v1553 = vmul.f32 %v1532, 1.442695
      %v1554 = vpow.pop %v1553
      %v1555 = vmul.f32 %v1533, 1.442695
      %v1556 = vpow.pop %v1555
      %v1557 = vmul.f32 %v1534, 1.442695
      %v1558 = vpow.pop %v1557
      %v1559 = vmul.f32 %v1535, 1.442695
      %v1560 = vpow.pop %v1559
      %v1561 = vmul.f32 %v1536, 1.442695
      %v1562 = vpow.pop %v1561
      %v1563 = vmul.f32 %v1537, 1.442695
      %v1564 = vpow.pop %v1563
      %v1565 = vmul.f32 %v1538, 1.442695
      %v1566 = vpow.pop %v1565
      %v1567 = vmul.f32 %v1539, 1.442695
      %v1568 = vpow.pop %v1567
      %v1569 = vmul.f32 %v1540, 1.442695
      %v1570 = vpow.pop %v1569
      %v1571 = vmul.f32 %v1541, 1.442695
      %v1572 = vpow.pop %v1571
      %v1573 = vmul.f32 %v1542, 1.442695
      %v1574 = vpow.pop %v1573
      %v1575 = vadd.f32 %v1544, 1.0
      %v1576 = vadd.f32 %v1546, 1.0
      %v1577 = vadd.f32 %v1548, 1.0
      %v1578 = vadd.f32 %v1550, 1.0
      %v1579 = vadd.f32 %v1552, 1.0
      %v1580 = vadd.f32 %v1554, 1.0
      %v1581 = vadd.f32 %v1556, 1.0
      %v1582 = vadd.f32 %v1558, 1.0
      %v1583 = vadd.f32 %v1560, 1.0
      %v1584 = vadd.f32 %v1562, 1.0
      %v1585 = vadd.f32 %v1564, 1.0
      %v1586 = vadd.f32 %v1566, 1.0
      %v1587 = vadd.f32 %v1568, 1.0
      %v1588 = vadd.f32 %v1570, 1.0
      %v1589 = vadd.f32 %v1572, 1.0
      %v1590 = vadd.f32 %v1574, 1.0
      %v1591 = vrcp.pop %v1575
      %v1592 = vmul.f32 1.0, %v1591
      %v1593 = vrcp.pop %v1576
      %v1594 = vmul.f32 1.0, %v1593
      %v1595 = vrcp.pop %v1577
      %v1596 = vmul.f32 1.0, %v1595
      %v1597 = vrcp.pop %v1578
      %v1598 = vmul.f32 1.0, %v1597
      %v1599 = vrcp.pop %v1579
      %v1600 = vmul.f32 1.0, %v1599
      %v1601 = vrcp.pop %v1580
      %v1602 = vmul.f32 1.0, %v1601
      %v1603 = vrcp.pop %v1581
      %v1604 = vmul.f32 1.0, %v1603
      %v1605 = vrcp.pop %v1582
      %v1606 = vmul.f32 1.0, %v1605
      %v1607 = vrcp.pop %v1583
      %v1608 = vmul.f32 1.0, %v1607
      %v1609 = vrcp.pop %v1584
      %v1610 = vmul.f32 1.0, %v1609
      %v1611 = vrcp.pop %v1585
      %v1612 = vmul.f32 1.0, %v1611
      %v1613 = vrcp.pop %v1586
      %v1614 = vmul.f32 1.0, %v1613
      %v1615 = vrcp.pop %v1587
      %v1616 = vmul.f32 1.0, %v1615
      %v1617 = vrcp.pop %v1588
      %v1618 = vmul.f32 1.0, %v1617
      %v1619 = vrcp.pop %v1589
      %v1620 = vmul.f32 1.0, %v1619
      %v1621 = vrcp.pop %v1590
      %v1622 = vmul.f32 1.0, %v1621
      %v1623 = vlaneseq
      %v1624 = vshrl.u32 %v1623, 7
      %v1625 = vadd.s32 %v1624, 8
      %v1626 = vadd.s32 %v1624, 16
      %v1627 = vadd.s32 %v1624, 24
      %v1628 = vadd.s32 %v1624, 32
      %v1629 = vadd.s32 %v1624, 40
      %v1630 = vadd.s32 %v1624, 48
      %v1631 = vadd.s32 %v1624, 56
      %v1632 = vadd.s32 %v1624, 64
      %v1633 = vadd.s32 %v1624, 72
      %v1634 = vadd.s32 %v1624, 80
      %v1635 = vadd.s32 %v1624, 88
      %v1636 = vadd.s32 %v1624, 96
      %v1637 = vadd.s32 %v1624, 104
      %v1638 = vadd.s32 %v1624, 112
      %v1639 = vadd.s32 %v1624, 120
      %s1640 = smul.u32 %s28, 128
      %s1641 = ssub.s32 256, %s1640
      %v1642 = vstv %s1641
      %vm1643 = vcmp.lt.s32.totalorder %v1624, %v1642
      %vm1644 = vcmp.lt.s32.totalorder %v1625, %v1642
      %vm1645 = vcmp.lt.s32.totalorder %v1626, %v1642
      %vm1646 = vcmp.lt.s32.totalorder %v1627, %v1642
      %vm1647 = vcmp.lt.s32.totalorder %v1628, %v1642
      %vm1648 = vcmp.lt.s32.totalorder %v1629, %v1642
      %vm1649 = vcmp.lt.s32.totalorder %v1630, %v1642
      %vm1650 = vcmp.lt.s32.totalorder %v1631, %v1642
      %vm1651 = vcmp.lt.s32.totalorder %v1632, %v1642
      %vm1652 = vcmp.lt.s32.totalorder %v1633, %v1642
      %vm1653 = vcmp.lt.s32.totalorder %v1634, %v1642
      %vm1654 = vcmp.lt.s32.totalorder %v1635, %v1642
      %vm1655 = vcmp.lt.s32.totalorder %v1636, %v1642
      %vm1656 = vcmp.lt.s32.totalorder %v1637, %v1642
      %vm1657 = vcmp.lt.s32.totalorder %v1638, %v1642
      %vm1658 = vcmp.lt.s32.totalorder %v1639, %v1642
      %v1659 = vsel %vm1643, %v1592, 0.0
      %v1660 = vsel %vm1644, %v1594, 0.0
      %v1661 = vsel %vm1645, %v1596, 0.0
      %v1662 = vsel %vm1646, %v1598, 0.0
      %v1663 = vsel %vm1647, %v1600, 0.0
      %v1664 = vsel %vm1648, %v1602, 0.0
      %v1665 = vsel %vm1649, %v1604, 0.0
      %v1666 = vsel %vm1650, %v1606, 0.0
      %v1667 = vsel %vm1651, %v1608, 0.0
      %v1668 = vsel %vm1652, %v1610, 0.0
      %v1669 = vsel %vm1653, %v1612, 0.0
      %v1670 = vsel %vm1654, %v1614, 0.0
      %v1671 = vsel %vm1655, %v1616, 0.0
      %v1672 = vsel %vm1656, %v1618, 0.0
      %v1673 = vsel %vm1657, %v1620, 0.0
      %v1674 = vsel %vm1658, %v1622, 0.0
      %vm1675 = vcmask 7168
      %v1676 = vsel %vm1675, %v1659, 0.0
      %v1677 = vsel %vm1675, %v1660, 0.0
      %v1678 = vadd.f32 %v1676, %v1677
      %v1679 = vsel %vm1675, %v1661, 0.0
      %v1680 = vadd.f32 %v1678, %v1679
      %v1681 = vsel %vm1675, %v1662, 0.0
      %v1682 = vadd.f32 %v1680, %v1681
      %v1683 = vsel %vm1675, %v1663, 0.0
      %v1684 = vadd.f32 %v1682, %v1683
      %v1685 = vsel %vm1675, %v1664, 0.0
      %v1686 = vadd.f32 %v1684, %v1685
      %v1687 = vsel %vm1675, %v1665, 0.0
      %v1688 = vadd.f32 %v1686, %v1687
      %v1689 = vsel %vm1675, %v1666, 0.0
      %v1690 = vadd.f32 %v1688, %v1689
      %v1691 = vsel %vm1675, %v1667, 0.0
      %v1692 = vadd.f32 %v1690, %v1691
      %v1693 = vsel %vm1675, %v1668, 0.0
      %v1694 = vadd.f32 %v1692, %v1693
      %v1695 = vsel %vm1675, %v1669, 0.0
      %v1696 = vadd.f32 %v1694, %v1695
      %v1697 = vsel %vm1675, %v1670, 0.0
      %v1698 = vadd.f32 %v1696, %v1697
      %v1699 = vsel %vm1675, %v1671, 0.0
      %v1700 = vadd.f32 %v1698, %v1699
      %v1701 = vsel %vm1675, %v1672, 0.0
      %v1702 = vadd.f32 %v1700, %v1701
      %v1703 = vsel %vm1675, %v1673, 0.0
      %v1704 = vadd.f32 %v1702, %v1703
      %v1705 = vsel %vm1675, %v1674, 0.0
      %v1706 = vadd.f32 %v1704, %v1705
      %1707 = vadd.xlane.f32.xlu0 %v1706
      %v1708 = vpop.xlane.xlu0 %1707
      %v1709 = vrot.slane %v1708, 4
      %v1710 = vadd.f32 %v1708, %v1709
      %v1711 = vrot.slane %v1710, 2
      %v1712 = vadd.f32 %v1710, %v1711
      %v1713 = vrot.slane %v1712, 1
      %v1714 = vadd.f32 %v1712, %v1713
      %s1715 = vtos %v1714
      %v1716 = vstv %s1715
      %vm1717 = vcmask 0
      %1718 = vst.msk [vmem:[%s516] sm:$0x1] %vm1717, %v1716
      %p1719 = scmp.lt.s32.totalorder %s28, 1
      %s1720 = scalar_select %p1719, %s28, 1
      %s1721 = scalar_lea.vmem %s15, %s1720
      // Predicated region
      $region81: #{tpu_custom_call.1} parent=79 // pred_check
        %p1722 = pneg %p371
      $region82: #{tpu_custom_call.1} parent=79 // pred_check_branch
        %1724 = sbr.rel (%p1722) target = $region84
      $region83: #{tpu_custom_call.1} parent=79 // pred_region
        _
      $region84: #{tpu_custom_call.1} parent=79 // pred_fallthru
        _
    $region80: #{tpu_custom_call.1} parent=5 // pred_fallthru
      _
    %p1725 = scmp.le.s32.totalorder 2, %s23
    // Predicated region
    $region85: #{tpu_custom_call.1} parent=5 // pred_check
      %p1726 = pneg %p1725
    $region86: #{tpu_custom_call.1} parent=5 // pred_check_branch
      %1728 = sbr.rel (%p1726) target = $region88
    $region87: #{tpu_custom_call.1} parent=5 // pred_region
      %s1729 = ssub.s32 %s23, 2
      // Predicated region
      $region89: #{tpu_custom_call.1} parent=87 // pred_check
        %p1730 = pneg %p377
      $region90: #{tpu_custom_call.1} parent=87 // pred_check_branch
        %1732 = sbr.rel (%p1730) target = $region92
      $region91: #{tpu_custom_call.1} parent=87 // pred_region
        %p1733 = scmp.lt.s32.totalorder %s29, 1
        %s1734 = scalar_select %p1733, %s29, 1
        %s1735 = scalar_lea.vmem %s15, %s1734
      $region92: #{tpu_custom_call.1} parent=87 // pred_fallthru
        _
    $region88: #{tpu_custom_call.1} parent=5 // pred_fallthru
      _
  $region6: #{tpu_custom_call.1} parent=0 // loop_footer
    %s27 = sadd.s32 1, %s23
  $region7: #{tpu_custom_call.1} parent=0 // loop_footer_branch
    %22 = sbr.rel target = $region3
  $region8: #{tpu_custom_call.1} parent=0 // loop_exit
    _

</llo_original>
